<compile_context>
chip_gen: v7x
topology: tpu7x:2x2x1
jax: 0.10.0
libtpu: 0.0.40
codegen_flags: <defaults>
</compile_context>

<pallas_src>
import jax
import jax.numpy as jnp
from jax.experimental import pallas as pl
from jax.experimental.pallas import tpu as pltpu


def _feat2sim_kernel(trow_ref, tcol_ref, a_ref, b_ref, sim_ref, label_ref):
    k = pl.program_id(2)

    # a_ref: (tm, tk) block of feats rows i (bf16)
    # b_ref: (tk, tn) block of feats.T (bf16)  -> standard MXU contraction, no XLU transpose.
    partial = jnp.dot(a_ref[...], b_ref[...], preferred_element_type=jnp.float32)

    @pl.when(k == 0)
    def _():
        # First k step for this (i, j) tile: initialize the resident output block
        # directly with the partial product (no zero-init + add round trip) and
        # emit the pairwise label tile once.
        sim_ref[...] = partial
        # Broadcasted pairwise equality: (tm, 1) == (1, tn) -> (tm, tn)
        # TODO(synk): PyTorch .long() is int64; TPU Pallas emits int32 here (values
        # identical). Could be int8 to cut label HBM writes 4x if downstream allows.
        label_ref[...] = (trow_ref[...] == tcol_ref[...]).astype(jnp.int32)

    @pl.when(k > 0)
    def _():
        # Accumulate directly into the VMEM-resident sim output block (f32).
        sim_ref[...] += partial


def feat2sim(feats, targets, *, tm=256, tn=256, tk=512, compute_dtype=jnp.bfloat16):
    """Pallas equivalent of BaseLoss.feat2sim.

    feats:   (N, D) float32
    targets: (N,)   integer labels
    returns: (sim (N, N) float32, label (N, N) int32)
    """
    N, D = feats.shape

    # Clamp tiles to the problem size (small-N / small-D friendly).
    tm = min(tm, N)
    tn = min(tn, N)
    tk = min(tk, D)
    # TODO(synk): support non-multiple N/D via pl.cdiv grids + masked edge tiles.
    assert N % tm == 0 and N % tn == 0 and D % tk == 0, "shape must tile evenly"

    # bf16 inputs, f32 accumulation (MXU-native on v5e/v6e/v7x). Transpose the RHS
    # copy once on the XLA side so the kernel contracts in standard (tk, tn) layout.
    feats_lhs = feats.astype(compute_dtype)          # (N, D)
    feats_rhs = feats_lhs.T                          # (D, N)

    targets = targets.astype(jnp.int32)
    t_row = targets.reshape(N, 1)                    # sublane-broadcast view
    t_col = targets.reshape(1, N)                    # lane-dense view

    grid = (N // tm, N // tn, D // tk)

    sim, label = pl.pallas_call(
        _feat2sim_kernel,
        out_shape=(
            jax.ShapeDtypeStruct((N, N), jnp.float32),
            jax.ShapeDtypeStruct((N, N), jnp.int32),
        ),
        grid_spec=pltpu.PrefetchScalarGridSpec(
            num_scalar_prefetch=0,
            grid=grid,
            in_specs=[
                pl.BlockSpec((tm, 1), lambda i, j, k: (i, 0)),    # targets rows
                pl.BlockSpec((1, tn), lambda i, j, k: (0, j)),    # targets cols
                pl.BlockSpec((tm, tk), lambda i, j, k: (i, k)),   # feats (lhs)
                pl.BlockSpec((tk, tn), lambda i, j, k: (k, j)),   # feats.T (rhs)
            ],
            out_specs=[
                pl.BlockSpec((tm, tn), lambda i, j, k: (i, j)),   # sim (resident over k)
                pl.BlockSpec((tm, tn), lambda i, j, k: (i, j)),   # label
            ],
        ),
        compiler_params=pltpu.CompilerParams(
            dimension_semantics=("parallel", "parallel", "arbitrary"),
        ),
    )(t_row, t_col, feats_lhs, feats_rhs)

    return sim, label


if __name__ == "__main__":
    # BaseLoss has no parameters (empty __init__); nothing to initialize.
    key = jax.random.PRNGKey(0)
    k_feat, k_tgt = jax.random.split(key)

    # Small-but-tiled demo shape: batch of 512 samples with 256-dim features
    # -> 2x2 parallel grid (keeps both v7x TensorCores busy), single k step.
    N, D = 512, 256
    feats = jax.random.normal(k_feat, (N, D), dtype=jnp.float32)
    targets = jax.random.randint(k_tgt, (N,), 0, 8, dtype=jnp.int32)

    sim, label = feat2sim(feats, targets)
    jax.block_until_ready((sim, label))

    # Reference at matching precision: bf16-cast inputs, f32 accumulation.
    feats_bf = feats.astype(jnp.bfloat16).astype(jnp.float32)
    sim_ref = feats_bf @ feats_bf.T
    label_ref = (targets[:, None] == targets[None, :]).astype(jnp.int32)

    assert jnp.allclose(sim, sim_ref, atol=5e-2, rtol=5e-3), float(
        jnp.max(jnp.abs(sim - sim_ref))
    )
    assert jnp.array_equal(label, label_ref)

    print("KERNEL_OK")
</pallas_src>

<mosaic_0001>
module attributes {stable_mosaic.version = 11 : i64} {
  func.func @_feat2sim_kernel(%arg0: i32, %arg1: i32, %arg2: i32, %arg3: memref<256x1xi32, #tpu.memory_space<vmem>>, %arg4: memref<1x256xi32, #tpu.memory_space<vmem>>, %arg5: memref<256x256xbf16, #tpu.memory_space<vmem>>, %arg6: memref<256x256xbf16, #tpu.memory_space<vmem>>, %arg7: memref<256x256xf32, #tpu.memory_space<vmem>>, %arg8: memref<256x256xi32, #tpu.memory_space<vmem>>) attributes {dimension_semantics = [#tpu.dimension_semantics<parallel>, #tpu.dimension_semantics<parallel>, #tpu.dimension_semantics<arbitrary>], iteration_bounds = array<i64: 2, 2, 1>, scalar_prefetch = 0 : i64, scratch_operands = 0 : i64, tpu.core_type = #tpu.core_type<tc>, window_params = [{transform_indices = @transform_0, window_bounds = array<i64: 256, 1>}, {transform_indices = @transform_1, window_bounds = array<i64: 1, 256>}, {transform_indices = @transform_2, window_bounds = array<i64: 256, 256>}, {transform_indices = @transform_3, window_bounds = array<i64: 256, 256>}, {transform_indices = @transform_4, window_bounds = array<i64: 256, 256>}, {transform_indices = @transform_5, window_bounds = array<i64: 256, 256>}]} {
    %c0 = arith.constant 0 : index
    %c0_0 = arith.constant 0 : index
    %0 = vector.load %arg5[%c0, %c0_0] : memref<256x256xbf16, #tpu.memory_space<vmem>>, vector<256x256xbf16>
    %c0_1 = arith.constant 0 : index
    %c0_2 = arith.constant 0 : index
    %1 = vector.load %arg6[%c0_1, %c0_2] : memref<256x256xbf16, #tpu.memory_space<vmem>>, vector<256x256xbf16>
    %cst = arith.constant dense<0.000000e+00> : vector<256x256xf32>
    %2 = tpu.matmul %0, %1, %cst {dimension_numbers = #tpu.dot_dimension_numbers<[1], [0], [0], [1], [0, 0, 1, 1], [], []>} : vector<256x256xbf16>, vector<256x256xbf16>, vector<256x256xf32> -> vector<256x256xf32>
    %c0_i32 = arith.constant 0 : i32
    %3 = arith.cmpi eq, %arg2, %c0_i32 : i32
    %4 = arith.extui %3 : i1 to i32
    %c0_i32_3 = arith.constant 0 : i32
    %5 = arith.cmpi ne, %4, %c0_i32_3 : i32
    scf.if %5 {
      %c0_6 = arith.constant 0 : index
      %c0_7 = arith.constant 0 : index
      %9 = vector.load %arg7[%c0_6, %c0_7] : memref<256x256xf32, #tpu.memory_space<vmem>>, vector<256x256xf32>
      tpu.vector_store %arg7[%c0_6, %c0_7], %2 {strides = array<i32>} : memref<256x256xf32, #tpu.memory_space<vmem>>, vector<256x256xf32>,
      %c0_8 = arith.constant 0 : index
      %c0_9 = arith.constant 0 : index
      %10 = vector.load %arg3[%c0_8, %c0_9] : memref<256x1xi32, #tpu.memory_space<vmem>>, vector<256x1xi32>
      %c0_10 = arith.constant 0 : index
      %c0_11 = arith.constant 0 : index
      %11 = vector.load %arg4[%c0_10, %c0_11] : memref<1x256xi32, #tpu.memory_space<vmem>>, vector<1x256xi32>
      %12 = vector.broadcast %10 : vector<256x1xi32> to vector<256x256xi32>
      %13 = vector.broadcast %11 : vector<1x256xi32> to vector<256x256xi32>
      %14 = arith.cmpi eq, %12, %13 : vector<256x256xi32>
      %15 = arith.extui %14 : vector<256x256xi1> to vector<256x256xi32>
      %c0_12 = arith.constant 0 : index
      %c0_13 = arith.constant 0 : index
      %16 = vector.load %arg8[%c0_12, %c0_13] : memref<256x256xi32, #tpu.memory_space<vmem>>, vector<256x256xi32>
      tpu.vector_store %arg8[%c0_12, %c0_13], %15 {strides = array<i32>} : memref<256x256xi32, #tpu.memory_space<vmem>>, vector<256x256xi32>,
    } else {
    }
    %c0_i32_4 = arith.constant 0 : i32
    %6 = arith.cmpi sgt, %arg2, %c0_i32_4 : i32
    %7 = arith.extui %6 : i1 to i32
    %c0_i32_5 = arith.constant 0 : i32
    %8 = arith.cmpi ne, %7, %c0_i32_5 : i32
    scf.if %8 {
      %c0_6 = arith.constant 0 : index
      %c0_7 = arith.constant 0 : index
      %9 = vector.load %arg7[%c0_6, %c0_7] : memref<256x256xf32, #tpu.memory_space<vmem>>, vector<256x256xf32>
      %10 = arith.addf %9, %2 : vector<256x256xf32>
      %c0_8 = arith.constant 0 : index
      %c0_9 = arith.constant 0 : index
      %11 = vector.load %arg7[%c0_8, %c0_9] : memref<256x256xf32, #tpu.memory_space<vmem>>, vector<256x256xf32>
      tpu.vector_store %arg7[%c0_8, %c0_9], %10 {strides = array<i32>} : memref<256x256xf32, #tpu.memory_space<vmem>>, vector<256x256xf32>,
    } else {
    }
    return
  }
  func.func @transform_0(%arg0: i32, %arg1: i32, %arg2: i32) -> (i32, i32) {
    %c0_i32 = arith.constant 0 : i32
    %c0_i32_0 = arith.constant 0 : i32
    return %arg0, %c0_i32 : i32, i32
  }
  func.func @transform_1(%arg0: i32, %arg1: i32, %arg2: i32) -> (i32, i32) {
    %c0_i32 = arith.constant 0 : i32
    %c0_i32_0 = arith.constant 0 : i32
    return %c0_i32, %arg1 : i32, i32
  }
  func.func @transform_2(%arg0: i32, %arg1: i32, %arg2: i32) -> (i32, i32) {
    %c0_i32 = arith.constant 0 : i32
    return %arg0, %arg2 : i32, i32
  }
  func.func @transform_3(%arg0: i32, %arg1: i32, %arg2: i32) -> (i32, i32) {
    %c0_i32 = arith.constant 0 : i32
    return %arg2, %arg1 : i32, i32
  }
  func.func @transform_4(%arg0: i32, %arg1: i32, %arg2: i32) -> (i32, i32) {
    %c0_i32 = arith.constant 0 : i32
    return %arg0, %arg1 : i32, i32
  }
  func.func @transform_5(%arg0: i32, %arg1: i32, %arg2: i32) -> (i32, i32) {
    %c0_i32 = arith.constant 0 : i32
    return %arg0, %arg1 : i32, i32
  }
}

</mosaic_0001>

<llo_original>
// kernel: tpu_custom_call.1
$region0: #{tpu_custom_call.1}
  #allocation0 [shape = 'u32[]', space=smem, size = 0x4, offset = 0x4, fixed_abs, tag = 'smem constant byte address 0x4 - core index']
  #allocation1 [shape = 'u32[144,128]{1,0:T(1,128)}', space=vmem, size = 0x12000, scoped, tag = 'internal scratch']
  %s0 = inlined_call_operand.vmem [shape: s32[512,1], index: 0, kind: input, shape index: {}]
  %s1 = inlined_call_operand.vmem [shape: s32[1,512], index: 1, kind: input, shape index: {}]
  %s2 = inlined_call_operand.vmem [shape: bf16[512,256], index: 2, kind: input, shape index: {}]
  %s3 = inlined_call_operand.hbm [shape: bf16[256,512], index: 3, kind: input, shape index: {}]
  %s4 = inlined_call_operand.hbm [shape: f32[512,512], index: 4, kind: output, shape index: {0}]
  %s5 = inlined_call_operand.hbm [shape: s32[512,512], index: 5, kind: output, shape index: {1}]
  %6 = xla_tuple %s4, %s5
  %s7 = sld [smem:[#allocation0]]
  $region69: #{tpu_custom_call.1} parent=0
    _
  %s9 = ssub.s32 1, %s7
  %s10 = scalar_select 0, %s9, %s7
  $region1: #{tpu_custom_call.1} parent=0
    #allocation2 [shape = 'u8[262144]{0}', space=vmem, size = 0x40000, scoped, tag = 'input window, operand 3']
    #allocation3 [shape = 's32[2]{0}', space=sflag, size = 0x8, scoped, tag = 'scoped memory for tpu_custom_call.1']
    #allocation4 [shape = 's32[2]{0}', space=sflag, size = 0x8, scoped, tag = 'scoped memory for tpu_custom_call.1']
    #allocation5 [shape = 'u8[524288]{0}', space=vmem, size = 0x80000, scoped, tag = 'output window, operand 0']
    #allocation6 [shape = 'u8[524288]{0}', space=vmem, size = 0x80000, scoped, tag = 'output window, operand 1']
    #allocation7 [shape = 's32[2]{0}', space=sflag, size = 0x8, scoped, tag = 'scoped memory for tpu_custom_call.1']
    %11 = vsyncpa [#allocation3], 0
    %s12 = scalar_lea.sflag [#allocation3], 1
    %13 = vsyncpa %s12, 0
    %14 = vsyncpa [#allocation4], 0
    %s15 = scalar_lea.sflag [#allocation4], 1
    %16 = vsyncpa %s15, 0
    %17 = vsyncpa [#allocation7], 0
    %s18 = scalar_lea.sflag [#allocation7], 1
    %19 = vsyncpa %s18, 0
    loop: start=0, step=1, limit=6
    $region2: #{tpu_custom_call.1} parent=1 // loop_pre_header
      _
    $region3: #{tpu_custom_call.1} parent=1 // loop_header
      %s21 = sphi 0, %s25
      %p22 = scmp.ge.s32.totalorder %s21, 6
      %s28 = sphi 0, %s47
      %s29 = sphi 0, %s43
      %s30 = sphi 0, %s39
      %s31 = sphi 0, %s28
      %s32 = sphi 0, %s29
      %s33 = sphi 0, %s30
      %s34 = sphi 0, %s31
      %s35 = sphi 0, %s32
      %s36 = sphi 0, %s33
      %s50 = sphi 0, %s52
      %s53 = sphi 0, %s50
      %s54 = sphi 0, %s53
      %s70 = sphi 0, %s54
      %s76 = sphi 0, %s78
      %s79 = sphi 0, %s76
      %s80 = sphi 0, %s79
      %s96 = sphi 0, %s80
      %s104 = sphi 0, %s106
      %s107 = sphi 0, %s104
      %s108 = sphi 0, %s107
      %s124 = sphi 0, %s108
      %s132 = sphi 0, %s134
      %s135 = sphi 0, %s132
      %s136 = sphi 0, %s135
      %s152 = sphi 0, %s136
      %s160 = sphi 0, %s162
      %s163 = sphi 0, %s160
      %s164 = sphi 0, %s163
      %s180 = sphi 0, %s164
      %s188 = sphi 0, %s190
      %s191 = sphi 0, %s188
      %s192 = sphi 0, %s191
      %s208 = sphi 0, %s192
    $region4: #{tpu_custom_call.1} parent=1 // loop_header_branch
      %24 = sbr.rel (%p22) target = $region8
    $region5: #{tpu_custom_call.1} parent=1 // loop_body
      %s26 = ssub.s32 %s21, 1
      %s27 = ssub.s32 %s21, 2
      %s37 = sadd.s32 1, %s30
      %p38 = scmp.ge.s32.totalorder %s37, 1
      %s39 = scalar_select %p38, 0, %s37
      %s40 = sadd.s32 1, %s29
      %s41 = scalar_select %p38, %s40, %s29
      %p42 = scmp.ge.s32.totalorder %s41, 2
      %s43 = scalar_select %p42, 0, %s41
      %s44 = sadd.s32 1, %s28
      %s45 = scalar_select %p42, %s44, %s28
      %p46 = scmp.ge.s32.totalorder %s45, 2
      %s47 = scalar_select %p46, 0, %s45
      %s48 = ssub.s32 %s28, %s47
      %p49 = scmp.eq.s32.totalorder %s48, 0
      %s51 = sadd.s32 %s50, 1
      %s52 = scalar_select %p49, %s50, %s51
      %p55 = pneg %p49
      %p56 = scmp.eq.s32.totalorder %s21, 3
      %p57 = por %p55, %p56
      %p58 = scmp.ne.s32.totalorder %s50, %s53
      %p59 = scmp.eq.s32.totalorder %s21, 0
      %p60 = por %p58, %p59
      %p61 = scmp.ne.s32.totalorder %s50, %s53
      %p62 = scmp.eq.s32.totalorder %s26, 3
      %p63 = por %p61, %p62
      %p64 = scmp.ne.s32.totalorder %s53, %s54
      %p65 = scmp.eq.s32.totalorder %s26, 0
      %p66 = por %p64, %p65
      %p67 = scmp.ne.s32.totalorder %s53, %s54
      %p68 = scmp.eq.s32.totalorder %s27, 3
      %p69 = por %p67, %p68
      %p71 = scmp.ne.s32.totalorder %s54, %s70
      %p72 = scmp.eq.s32.totalorder %s27, 0
      %p73 = por %p71, %p72
      %s74 = ssub.s32 %s29, %s43
      %p75 = scmp.eq.s32.totalorder %s74, 0
      %s77 = sadd.s32 %s76, 1
      %s78 = scalar_select %p75, %s76, %s77
      %p81 = pneg %p75
      %p82 = scmp.eq.s32.totalorder %s21, 3
      %p83 = por %p81, %p82
      %p84 = scmp.ne.s32.totalorder %s76, %s79
      %p85 = scmp.eq.s32.totalorder %s21, 0
      %p86 = por %p84, %p85
      %p87 = scmp.ne.s32.totalorder %s76, %s79
      %p88 = scmp.eq.s32.totalorder %s26, 3
      %p89 = por %p87, %p88
      %p90 = scmp.ne.s32.totalorder %s79, %s80
      %p91 = scmp.eq.s32.totalorder %s26, 0
      %p92 = por %p90, %p91
      %p93 = scmp.ne.s32.totalorder %s79, %s80
      %p94 = scmp.eq.s32.totalorder %s27, 3
      %p95 = por %p93, %p94
      %p97 = scmp.ne.s32.totalorder %s80, %s96
      %p98 = scmp.eq.s32.totalorder %s27, 0
      %p99 = por %p97, %p98
      %s100 = ssub.s32 %s28, %s47
      %s101 = ssub.s32 %s30, %s39
      %s102 = sor.u32 %s100, %s101
      %p103 = scmp.eq.s32.totalorder %s102, 0
      %s105 = sadd.s32 %s104, 1
      %s106 = scalar_select %p103, %s104, %s105
      %p109 = pneg %p103
      %p110 = scmp.eq.s32.totalorder %s21, 3
      %p111 = por %p109, %p110
      %p112 = scmp.ne.s32.totalorder %s104, %s107
      %p113 = scmp.eq.s32.totalorder %s21, 0
      %p114 = por %p112, %p113
      %p115 = scmp.ne.s32.totalorder %s104, %s107
      %p116 = scmp.eq.s32.totalorder %s26, 3
      %p117 = por %p115, %p116
      %p118 = scmp.ne.s32.totalorder %s107, %s108
      %p119 = scmp.eq.s32.totalorder %s26, 0
      %p120 = por %p118, %p119
      %p121 = scmp.ne.s32.totalorder %s107, %s108
      %p122 = scmp.eq.s32.totalorder %s27, 3
      %p123 = por %p121, %p122
      %p125 = scmp.ne.s32.totalorder %s108, %s124
      %p126 = scmp.eq.s32.totalorder %s27, 0
      %p127 = por %p125, %p126
      %s128 = ssub.s32 %s30, %s39
      %s129 = ssub.s32 %s29, %s43
      %s130 = sor.u32 %s128, %s129
      %p131 = scmp.eq.s32.totalorder %s130, 0
      %s133 = sadd.s32 %s132, 1
      %s134 = scalar_select %p131, %s132, %s133
      %p137 = pneg %p131
      %p138 = scmp.eq.s32.totalorder %s21, 3
      %p139 = por %p137, %p138
      %p140 = scmp.ne.s32.totalorder %s132, %s135
      %p141 = scmp.eq.s32.totalorder %s21, 0
      %p142 = por %p140, %p141
      %p143 = scmp.ne.s32.totalorder %s132, %s135
      %p144 = scmp.eq.s32.totalorder %s26, 3
      %p145 = por %p143, %p144
      %p146 = scmp.ne.s32.totalorder %s135, %s136
      %p147 = scmp.eq.s32.totalorder %s26, 0
      %p148 = por %p146, %p147
      %p149 = scmp.ne.s32.totalorder %s135, %s136
      %p150 = scmp.eq.s32.totalorder %s27, 3
      %p151 = por %p149, %p150
      %p153 = scmp.ne.s32.totalorder %s136, %s152
      %p154 = scmp.eq.s32.totalorder %s27, 0
      %p155 = por %p153, %p154
      %s156 = ssub.s32 %s28, %s47
      %s157 = ssub.s32 %s29, %s43
      %s158 = sor.u32 %s156, %s157
      %p159 = scmp.eq.s32.totalorder %s158, 0
      %s161 = sadd.s32 %s160, 1
      %s162 = scalar_select %p159, %s160, %s161
      %p165 = pneg %p159
      %p166 = scmp.eq.s32.totalorder %s21, 3
      %p167 = por %p165, %p166
      %p168 = scmp.ne.s32.totalorder %s160, %s163
      %p169 = scmp.eq.s32.totalorder %s21, 0
      %p170 = por %p168, %p169
      %p171 = scmp.ne.s32.totalorder %s160, %s163
      %p172 = scmp.eq.s32.totalorder %s26, 3
      %p173 = por %p171, %p172
      %p174 = scmp.ne.s32.totalorder %s163, %s164
      %p175 = scmp.eq.s32.totalorder %s26, 0
      %p176 = por %p174, %p175
      %p177 = scmp.ne.s32.totalorder %s163, %s164
      %p178 = scmp.eq.s32.totalorder %s27, 3
      %p179 = por %p177, %p178
      %p181 = scmp.ne.s32.totalorder %s164, %s180
      %p182 = scmp.eq.s32.totalorder %s27, 0
      %p183 = por %p181, %p182
      %s184 = ssub.s32 %s28, %s47
      %s185 = ssub.s32 %s29, %s43
      %s186 = sor.u32 %s184, %s185
      %p187 = scmp.eq.s32.totalorder %s186, 0
      %s189 = sadd.s32 %s188, 1
      %s190 = scalar_select %p187, %s188, %s189
      %p193 = pneg %p187
      %p194 = scmp.eq.s32.totalorder %s21, 3
      %p195 = por %p193, %p194
      %p196 = scmp.ne.s32.totalorder %s188, %s191
      %p197 = scmp.eq.s32.totalorder %s21, 0
      %p198 = por %p196, %p197
      %p199 = scmp.ne.s32.totalorder %s188, %s191
      %p200 = scmp.eq.s32.totalorder %s26, 3
      %p201 = por %p199, %p200
      %p202 = scmp.ne.s32.totalorder %s191, %s192
      %p203 = scmp.eq.s32.totalorder %s26, 0
      %p204 = por %p202, %p203
      %p205 = scmp.ne.s32.totalorder %s191, %s192
      %p206 = scmp.eq.s32.totalorder %s27, 3
      %p207 = por %p205, %p206
      %p209 = scmp.ne.s32.totalorder %s192, %s208
      %p210 = scmp.eq.s32.totalorder %s27, 0
      %p211 = por %p209, %p210
      %p212 = scmp.le.s32.totalorder 1, %s21
      %p213 = scmp.lt.s32.totalorder %s21, 5
      %p214 = pnand %p212, %p213
      %p215 = pneg %p214
      // Predicated region
      $region9: #{tpu_custom_call.1} parent=5 // pred_check
        _
      $region10: #{tpu_custom_call.1} parent=5 // pred_check_branch
        %217 = sbr.rel (%p214) target = $region12
      $region11: #{tpu_custom_call.1} parent=5 // pred_region
        %s218 = ssub.s32 %s21, 1
      $region12: #{tpu_custom_call.1} parent=5 // pred_fallthru
        _
      %p219 = scmp.lt.s32.totalorder %s21, 4
      // Predicated region
      $region13: #{tpu_custom_call.1} parent=5 // pred_check
        %p220 = pneg %p219
      $region14: #{tpu_custom_call.1} parent=5 // pred_check_branch
        %222 = sbr.rel (%p220) target = $region16
      $region15: #{tpu_custom_call.1} parent=5 // pred_region
        // Predicated region
        $region17: #{tpu_custom_call.1} parent=15 // pred_check
          %p223 = pneg %p60
        $region18: #{tpu_custom_call.1} parent=15 // pred_check_branch
          %225 = sbr.rel (%p223) target = $region20
        $region19: #{tpu_custom_call.1} parent=15 // pred_region
          %s226 = smul.u32 32, %s28
          %p227 = scmp.lt.s32.totalorder %s226, 63
          %s228 = scalar_select %p227, %s226, 63
          %s229 = smul.addr %s228, 8
          %s230 = scalar_lea.vmem %s0, %s229
          %s231 = smul.u32 32, %s28
        $region20: #{tpu_custom_call.1} parent=15 // pred_fallthru
          _
        // Predicated region
        $region21: #{tpu_custom_call.1} parent=15 // pred_check
          %p232 = pneg %p86
        $region22: #{tpu_custom_call.1} parent=15 // pred_check_branch
          %234 = sbr.rel (%p232) target = $region24
        $region23: #{tpu_custom_call.1} parent=15 // pred_region
          %s235 = smul.u32 2, %s29
          %p236 = scmp.lt.s32.totalorder %s235, 3
          %s237 = scalar_select %p236, %s235, 3
          %s238 = scalar_lea.vmem %s1, %s237
          %s239 = smul.u32 2, %s29
        $region24: #{tpu_custom_call.1} parent=15 // pred_fallthru
          _
        // Predicated region
        $region25: #{tpu_custom_call.1} parent=15 // pred_check
          %p240 = pneg %p114
        $region26: #{tpu_custom_call.1} parent=15 // pred_check_branch
          %242 = sbr.rel (%p240) target = $region28
        $region27: #{tpu_custom_call.1} parent=15 // pred_region
          %s243 = smul.u32 32, %s28
          %s244 = smul.u32 2, %s30
          %p245 = scmp.lt.s32.totalorder %s243, 63
          %s246 = scalar_select %p245, %s243, 63
          %p247 = scmp.lt.s32.totalorder %s244, 1
          %s248 = scalar_select %p247, %s244, 1
          %s249 = smul.addr %s246, 2
          %s250 = sadd.s32 %s248, %s249
          %s251 = smul.addr %s250, 4
          %s252 = scalar_lea.vmem %s2, %s251
          %s253 = smul.u32 32, %s28
          %s254 = smul.u32 2, %s30
        $region28: #{tpu_custom_call.1} parent=15 // pred_fallthru
          _
        // Predicated region
        $region29: #{tpu_custom_call.1} parent=15 // pred_check
          %p255 = pneg %p142
        $region30: #{tpu_custom_call.1} parent=15 // pred_check_branch
          %257 = sbr.rel (%p255) target = $region32
        $region31: #{tpu_custom_call.1} parent=15 // pred_region
          %s258 = sand.u32 %s132, 1
          %s259 = scalar_lea.sflag [#allocation3], %s258
          %s260 = sand.u32 %s132, 1
          %s261 = smul.addr %s260, 256
          %s262 = scalar_lea.vmem [#allocation2], %s261
          %s263 = smul.u32 32, %s30
          %s264 = smul.u32 2, %s29
          %s266 = ssub.s32 4096, 4096
          %267 = vsyncadd %s259, %s266
          %s268 = smul.addr %s263, 4
          %s269 = sadd.s32 %s264, %s268
          %s270 = smul.addr %s269, 64
          %s271 = scalar_lea.hbm %s3, %s270
          %s272 = sshll.u32 %s262, 4
          %s273 = int_to_ptr.vmem [resolvable:$true] %s272
          %278 = dma.hbm_to_vmem [thread:$0]  %s271, 4096, %s273, %s259, 256, 128, 8
        $region32: #{tpu_custom_call.1} parent=15 // pred_fallthru
          _
      $region16: #{tpu_custom_call.1} parent=5 // pred_fallthru
        _
      %p279 = scmp.le.s32.totalorder 1, %s21
      %p280 = scmp.lt.s32.totalorder %s21, 5
      %p281 = pnand %p279, %p280
      %p282 = pneg %p281
      // Predicated region
      $region33: #{tpu_custom_call.1} parent=5 // pred_check
        _
      $region34: #{tpu_custom_call.1} parent=5 // pred_check_branch
        %284 = sbr.rel (%p281) target = $region36
      $region35: #{tpu_custom_call.1} parent=5 // pred_region
        %s285 = ssub.s32 %s21, 1
        %s286 = sand.u32 %s135, 1
        %s287 = scalar_lea.sflag [#allocation3], %s286
        %s288 = sand.u32 %s135, 1
        %s289 = smul.addr %s288, 256
        %s290 = scalar_lea.vmem [#allocation2], %s289
        // Predicated region
        $region37: #{tpu_custom_call.1} parent=35 // pred_check
          %p291 = pneg %p148
        $region38: #{tpu_custom_call.1} parent=35 // pred_check_branch
          %293 = sbr.rel (%p291) target = $region40
        $region39: #{tpu_custom_call.1} parent=35 // pred_region
          %294 = dma.done %s287, 4096
        $region40: #{tpu_custom_call.1} parent=35 // pred_fallthru
          _
        %s295 = smul.u32 32, %s31
        %p296 = scmp.lt.s32.totalorder %s295, 63
        %s297 = scalar_select %p296, %s295, 63
        %s298 = smul.addr %s297, 8
        %s299 = scalar_lea.vmem %s0, %s298
        %p300 = pneg %p66
        %p301 = pneg %p63
        %s302 = smul.u32 2, %s32
        %p303 = scmp.lt.s32.totalorder %s302, 3
        %s304 = scalar_select %p303, %s302, 3
        %s305 = scalar_lea.vmem %s1, %s304
        %p306 = pneg %p92
        %p307 = pneg %p89
        %s308 = smul.u32 32, %s31
        %s309 = smul.u32 2, %s33
        %p310 = scmp.lt.s32.totalorder %s308, 63
        %s311 = scalar_select %p310, %s308, 63
        %p312 = scmp.lt.s32.totalorder %s309, 1
        %s313 = scalar_select %p312, %s309, 1
        %s314 = smul.addr %s311, 2
        %s315 = sadd.s32 %s313, %s314
        %s316 = smul.addr %s315, 4
        %s317 = scalar_lea.vmem %s2, %s316
        %p318 = pneg %p120
        %p319 = pneg %p117
        %s320 = sand.u32 %s135, 1
        %s321 = scalar_lea.sflag [#allocation3], %s320
        %s322 = sand.u32 %s135, 1
        %s323 = smul.addr %s322, 256
        %s324 = scalar_lea.vmem [#allocation2], %s323
        %p325 = pneg %p148
        %p326 = pneg %p145
        %p327 = pneg %p176
        %p328 = pneg %p173
        %s329 = sand.u32 %s163, 1
        %s330 = scalar_lea.sflag [#allocation4], %s329
        %s331 = sand.u32 %s163, 1
        %s332 = smul.addr %s331, 512
        %s333 = scalar_lea.vmem [#allocation5], %s332
        %p334 = pneg %p204
        %p335 = pneg %p201
        %s336 = sand.u32 %s191, 1
        %s337 = scalar_lea.sflag [#allocation7], %s336
        %s338 = sand.u32 %s191, 1
        %s339 = smul.addr %s338, 512
        %s340 = scalar_lea.vmem [#allocation6], %s339
        %s341 = smul.u32 32, %s31
        %p342 = scmp.lt.s32.totalorder %s341, 63
        %s343 = scalar_select %p342, %s341, 63
        %s344 = smul.addr %s343, 8
        %s345 = scalar_lea.vmem %s0, %s344
        %s346 = smul.u32 32, %s31
        %s347 = smul.u32 2, %s32
        %p348 = scmp.lt.s32.totalorder %s347, 3
        %s349 = scalar_select %p348, %s347, 3
        %s350 = scalar_lea.vmem %s1, %s349
        %s351 = smul.u32 2, %s32
        %s352 = smul.u32 32, %s31
        %s353 = smul.u32 2, %s33
        %p354 = scmp.lt.s32.totalorder %s352, 63
        %s355 = scalar_select %p354, %s352, 63
        %p356 = scmp.lt.s32.totalorder %s353, 1
        %s357 = scalar_select %p356, %s353, 1
        %s358 = smul.addr %s355, 2
        %s359 = sadd.s32 %s357, %s358
        %s360 = smul.addr %s359, 4
        %s361 = scalar_lea.vmem %s2, %s360
        %s362 = smul.u32 32, %s31
        %s363 = smul.u32 2, %s33
        %s364 = smul.u32 32, %s33
        %s365 = smul.u32 2, %s32
        %s366 = smul.u32 32, %s31
        %s367 = smul.u32 2, %s32
        %s368 = smul.u32 32, %s31
        %s369 = smul.u32 2, %s32
        %v370 = vld [vmem:[%s361] sm:$0xff]
        %v371 = vld [vmem:[%s361 + $0x8] sm:$0xff]
        %v372 = vld [vmem:[%s361 + $0x10] sm:$0xff]
        %v373 = vld [vmem:[%s361 + $0x18] sm:$0xff]
        %v374 = vld [vmem:[%s361 + $0x20] sm:$0xff]
        %v375 = vld [vmem:[%s361 + $0x28] sm:$0xff]
        %v376 = vld [vmem:[%s361 + $0x30] sm:$0xff]
        %v377 = vld [vmem:[%s361 + $0x38] sm:$0xff]
        %v378 = vld [vmem:[%s361 + $0x40] sm:$0xff]
        %v379 = vld [vmem:[%s361 + $0x48] sm:$0xff]
        %v380 = vld [vmem:[%s361 + $0x50] sm:$0xff]
        %v381 = vld [vmem:[%s361 + $0x58] sm:$0xff]
        %v382 = vld [vmem:[%s361 + $0x60] sm:$0xff]
        %v383 = vld [vmem:[%s361 + $0x68] sm:$0xff]
        %v384 = vld [vmem:[%s361 + $0x70] sm:$0xff]
        %v385 = vld [vmem:[%s361 + $0x78] sm:$0xff]
        %v386 = vld [vmem:[%s361 + $0x80] sm:$0xff]
        %v387 = vld [vmem:[%s361 + $0x88] sm:$0xff]
        %v388 = vld [vmem:[%s361 + $0x90] sm:$0xff]
        %v389 = vld [vmem:[%s361 + $0x98] sm:$0xff]
        %v390 = vld [vmem:[%s361 + $0xa0] sm:$0xff]
        %v391 = vld [vmem:[%s361 + $0xa8] sm:$0xff]
        %v392 = vld [vmem:[%s361 + $0xb0] sm:$0xff]
        %v393 = vld [vmem:[%s361 + $0xb8] sm:$0xff]
        %v394 = vld [vmem:[%s361 + $0xc0] sm:$0xff]
        %v395 = vld [vmem:[%s361 + $0xc8] sm:$0xff]
        %v396 = vld [vmem:[%s361 + $0xd0] sm:$0xff]
        %v397 = vld [vmem:[%s361 + $0xd8] sm:$0xff]
        %v398 = vld [vmem:[%s361 + $0xe0] sm:$0xff]
        %v399 = vld [vmem:[%s361 + $0xe8] sm:$0xff]
        %v400 = vld [vmem:[%s361 + $0xf0] sm:$0xff]
        %v401 = vld [vmem:[%s361 + $0xf8] sm:$0xff]
        %v402 = vld [vmem:[%s290] sm:$0xff]
        %v403 = vld [vmem:[%s290 + $0x8] sm:$0xff]
        %v404 = vld [vmem:[%s290 + $0x10] sm:$0xff]
        %v405 = vld [vmem:[%s290 + $0x18] sm:$0xff]
        %v406 = vld [vmem:[%s290 + $0x20] sm:$0xff]
        %v407 = vld [vmem:[%s290 + $0x28] sm:$0xff]
        %v408 = vld [vmem:[%s290 + $0x30] sm:$0xff]
        %v409 = vld [vmem:[%s290 + $0x38] sm:$0xff]
        %v410 = vld [vmem:[%s290 + $0x40] sm:$0xff]
        %v411 = vld [vmem:[%s290 + $0x48] sm:$0xff]
        %v412 = vld [vmem:[%s290 + $0x50] sm:$0xff]
        %v413 = vld [vmem:[%s290 + $0x58] sm:$0xff]
        %v414 = vld [vmem:[%s290 + $0x60] sm:$0xff]
        %v415 = vld [vmem:[%s290 + $0x68] sm:$0xff]
        %v416 = vld [vmem:[%s290 + $0x70] sm:$0xff]
        %v417 = vld [vmem:[%s290 + $0x78] sm:$0xff]
        %v418 = vld [vmem:[%s290 + $0x80] sm:$0xff]
        %v419 = vld [vmem:[%s290 + $0x88] sm:$0xff]
        %v420 = vld [vmem:[%s290 + $0x90] sm:$0xff]
        %v421 = vld [vmem:[%s290 + $0x98] sm:$0xff]
        %v422 = vld [vmem:[%s290 + $0xa0] sm:$0xff]
        %v423 = vld [vmem:[%s290 + $0xa8] sm:$0xff]
        %v424 = vld [vmem:[%s290 + $0xb0] sm:$0xff]
        %v425 = vld [vmem:[%s290 + $0xb8] sm:$0xff]
        %v426 = vld [vmem:[%s290 + $0xc0] sm:$0xff]
        %v427 = vld [vmem:[%s290 + $0xc8] sm:$0xff]
        %v428 = vld [vmem:[%s290 + $0xd0] sm:$0xff]
        %v429 = vld [vmem:[%s290 + $0xd8] sm:$0xff]
        %v430 = vld [vmem:[%s290 + $0xe0] sm:$0xff]
        %v431 = vld [vmem:[%s290 + $0xe8] sm:$0xff]
        %v432 = vld [vmem:[%s290 + $0xf0] sm:$0xff]
        %v433 = vld [vmem:[%s290 + $0xf8] sm:$0xff]
        %v466 = vunpack.c.l.b16 %v370
        %v467 = vunpack.c.h.b16 %v370
        %v468 = vunpack.c.l.b16 %v371
        %v469 = vunpack.c.h.b16 %v371
        %v470 = vunpack.c.l.b16 %v372
        %v471 = vunpack.c.h.b16 %v372
        %v472 = vunpack.c.l.b16 %v373
        %v473 = vunpack.c.h.b16 %v373
        %v474 = vunpack.c.l.b16 %v374
        %v475 = vunpack.c.h.b16 %v374
        %v476 = vunpack.c.l.b16 %v375
        %v477 = vunpack.c.h.b16 %v375
        %v478 = vunpack.c.l.b16 %v376
        %v479 = vunpack.c.h.b16 %v376
        %v480 = vunpack.c.l.b16 %v377
        %v481 = vunpack.c.h.b16 %v377
        %v482 = vunpack.c.l.b16 %v378
        %v483 = vunpack.c.h.b16 %v378
        %v484 = vunpack.c.l.b16 %v379
        %v485 = vunpack.c.h.b16 %v379
        %v486 = vunpack.c.l.b16 %v380
        %v487 = vunpack.c.h.b16 %v380
        %v488 = vunpack.c.l.b16 %v381
        %v489 = vunpack.c.h.b16 %v381
        %v490 = vunpack.c.l.b16 %v382
        %v491 = vunpack.c.h.b16 %v382
        %v492 = vunpack.c.l.b16 %v383
        %v493 = vunpack.c.h.b16 %v383
        %v494 = vunpack.c.l.b16 %v384
        %v495 = vunpack.c.h.b16 %v384
        %v496 = vunpack.c.l.b16 %v385
        %v497 = vunpack.c.h.b16 %v385
        %v498 = vunpack.c.l.b16 %v386
        %v499 = vunpack.c.h.b16 %v386
        %v500 = vunpack.c.l.b16 %v387
        %v501 = vunpack.c.h.b16 %v387
        %v502 = vunpack.c.l.b16 %v388
        %v503 = vunpack.c.h.b16 %v388
        %v504 = vunpack.c.l.b16 %v389
        %v505 = vunpack.c.h.b16 %v389
        %v506 = vunpack.c.l.b16 %v390
        %v507 = vunpack.c.h.b16 %v390
        %v508 = vunpack.c.l.b16 %v391
        %v509 = vunpack.c.h.b16 %v391
        %v510 = vunpack.c.l.b16 %v392
        %v511 = vunpack.c.h.b16 %v392
        %v512 = vunpack.c.l.b16 %v393
        %v513 = vunpack.c.h.b16 %v393
        %v514 = vunpack.c.l.b16 %v394
        %v515 = vunpack.c.h.b16 %v394
        %v516 = vunpack.c.l.b16 %v395
        %v517 = vunpack.c.h.b16 %v395
        %v518 = vunpack.c.l.b16 %v396
        %v519 = vunpack.c.h.b16 %v396
        %v520 = vunpack.c.l.b16 %v397
        %v521 = vunpack.c.h.b16 %v397
        %v522 = vunpack.c.l.b16 %v398
        %v523 = vunpack.c.h.b16 %v398
        %v524 = vunpack.c.l.b16 %v399
        %v525 = vunpack.c.h.b16 %v399
        %v526 = vunpack.c.l.b16 %v400
        %v527 = vunpack.c.h.b16 %v400
        %v528 = vunpack.c.l.b16 %v401
        %v529 = vunpack.c.h.b16 %v401
        %v530 = vpack.c.b16 %v468, %v466
        %v531 = vpack.c.b16 %v469, %v467
        %v532 = vpack.c.b16 %v472, %v470
        %v533 = vpack.c.b16 %v473, %v471
        %v534 = vpack.c.b16 %v476, %v474
        %v535 = vpack.c.b16 %v477, %v475
        %v536 = vpack.c.b16 %v480, %v478
        %v537 = vpack.c.b16 %v481, %v479
        %v538 = vpack.c.b16 %v484, %v482
        %v539 = vpack.c.b16 %v485, %v483
        %v540 = vpack.c.b16 %v488, %v486
        %v541 = vpack.c.b16 %v489, %v487
        %v542 = vpack.c.b16 %v492, %v490
        %v543 = vpack.c.b16 %v493, %v491
        %v544 = vpack.c.b16 %v496, %v494
        %v545 = vpack.c.b16 %v497, %v495
        %v546 = vpack.c.b16 %v500, %v498
        %v547 = vpack.c.b16 %v501, %v499
        %v548 = vpack.c.b16 %v504, %v502
        %v549 = vpack.c.b16 %v505, %v503
        %v550 = vpack.c.b16 %v508, %v506
        %v551 = vpack.c.b16 %v509, %v507
        %v552 = vpack.c.b16 %v512, %v510
        %v553 = vpack.c.b16 %v513, %v511
        %v554 = vpack.c.b16 %v516, %v514
        %v555 = vpack.c.b16 %v517, %v515
        %v556 = vpack.c.b16 %v520, %v518
        %v557 = vpack.c.b16 %v521, %v519
        %v558 = vpack.c.b16 %v524, %v522
        %v559 = vpack.c.b16 %v525, %v523
        %v560 = vpack.c.b16 %v528, %v526
        %v561 = vpack.c.b16 %v529, %v527
        %v626 = vunpack.c.l.b16 %v402
        %v627 = vunpack.c.h.b16 %v402
        %v628 = vunpack.c.l.b16 %v403
        %v629 = vunpack.c.h.b16 %v403
        %v630 = vunpack.c.l.b16 %v404
        %v631 = vunpack.c.h.b16 %v404
        %v632 = vunpack.c.l.b16 %v405
        %v633 = vunpack.c.h.b16 %v405
        %v634 = vunpack.c.l.b16 %v406
        %v635 = vunpack.c.h.b16 %v406
        %v636 = vunpack.c.l.b16 %v407
        %v637 = vunpack.c.h.b16 %v407
        %v638 = vunpack.c.l.b16 %v408
        %v639 = vunpack.c.h.b16 %v408
        %v640 = vunpack.c.l.b16 %v409
        %v641 = vunpack.c.h.b16 %v409
        %v642 = vunpack.c.l.b16 %v410
        %v643 = vunpack.c.h.b16 %v410
        %v644 = vunpack.c.l.b16 %v411
        %v645 = vunpack.c.h.b16 %v411
        %v646 = vunpack.c.l.b16 %v412
        %v647 = vunpack.c.h.b16 %v412
        %v648 = vunpack.c.l.b16 %v413
        %v649 = vunpack.c.h.b16 %v413
        %v650 = vunpack.c.l.b16 %v414
        %v651 = vunpack.c.h.b16 %v414
        %v652 = vunpack.c.l.b16 %v415
        %v653 = vunpack.c.h.b16 %v415
        %v654 = vunpack.c.l.b16 %v416
        %v655 = vunpack.c.h.b16 %v416
        %v656 = vunpack.c.l.b16 %v417
        %v657 = vunpack.c.h.b16 %v417
        %v658 = vunpack.c.l.b16 %v418
        %v659 = vunpack.c.h.b16 %v418
        %v660 = vunpack.c.l.b16 %v419
        %v661 = vunpack.c.h.b16 %v419
        %v662 = vunpack.c.l.b16 %v420
        %v663 = vunpack.c.h.b16 %v420
        %v664 = vunpack.c.l.b16 %v421
        %v665 = vunpack.c.h.b16 %v421
        %v666 = vunpack.c.l.b16 %v422
        %v667 = vunpack.c.h.b16 %v422
        %v668 = vunpack.c.l.b16 %v423
        %v669 = vunpack.c.h.b16 %v423
        %v670 = vunpack.c.l.b16 %v424
        %v671 = vunpack.c.h.b16 %v424
        %v672 = vunpack.c.l.b16 %v425
        %v673 = vunpack.c.h.b16 %v425
        %v674 = vunpack.c.l.b16 %v426
        %v675 = vunpack.c.h.b16 %v426
        %v676 = vunpack.c.l.b16 %v427
        %v677 = vunpack.c.h.b16 %v427
        %v678 = vunpack.c.l.b16 %v428
        %v679 = vunpack.c.h.b16 %v428
        %v680 = vunpack.c.l.b16 %v429
        %v681 = vunpack.c.h.b16 %v429
        %v682 = vunpack.c.l.b16 %v430
        %v683 = vunpack.c.h.b16 %v430
        %v684 = vunpack.c.l.b16 %v431
        %v685 = vunpack.c.h.b16 %v431
        %v686 = vunpack.c.l.b16 %v432
        %v687 = vunpack.c.h.b16 %v432
        %v688 = vunpack.c.l.b16 %v433
        %v689 = vunpack.c.h.b16 %v433
        %v690 = vpack.c.b16 %v628, %v626
        %v691 = vpack.c.b16 %v629, %v627
        %v692 = vpack.c.b16 %v632, %v630
        %v693 = vpack.c.b16 %v633, %v631
        %v694 = vpack.c.b16 %v636, %v634
        %v695 = vpack.c.b16 %v637, %v635
        %v696 = vpack.c.b16 %v640, %v638
        %v697 = vpack.c.b16 %v641, %v639
        %v698 = vpack.c.b16 %v644, %v642
        %v699 = vpack.c.b16 %v645, %v643
        %v700 = vpack.c.b16 %v648, %v646
        %v701 = vpack.c.b16 %v649, %v647
        %v702 = vpack.c.b16 %v652, %v650
        %v703 = vpack.c.b16 %v653, %v651
        %v704 = vpack.c.b16 %v656, %v654
        %v705 = vpack.c.b16 %v657, %v655
        %v706 = vpack.c.b16 %v660, %v658
        %v707 = vpack.c.b16 %v661, %v659
        %v708 = vpack.c.b16 %v664, %v662
        %v709 = vpack.c.b16 %v665, %v663
        %v710 = vpack.c.b16 %v668, %v666
        %v711 = vpack.c.b16 %v669, %v667
        %v712 = vpack.c.b16 %v672, %v670
        %v713 = vpack.c.b16 %v673, %v671
        %v714 = vpack.c.b16 %v676, %v674
        %v715 = vpack.c.b16 %v677, %v675
        %v716 = vpack.c.b16 %v680, %v678
        %v717 = vpack.c.b16 %v681, %v679
        %v718 = vpack.c.b16 %v684, %v682
        %v719 = vpack.c.b16 %v685, %v683
        %v720 = vpack.c.b16 %v688, %v686
        %v721 = vpack.c.b16 %v689, %v687
        %754 = vmatprep.subr.bf16.mxu0 %v691
        %755 = vmatpush1.bf16.msra.mxu0 %v690
        %756 = vmatprep.subr.bf16.mxu0 %v693
        %757 = vmatpush1.bf16.msra.mxu0 %v692
        %758 = vmatprep.subr.bf16.mxu0 %v695
        %759 = vmatpush1.bf16.msra.mxu0 %v694
        %760 = vmatprep.subr.bf16.mxu0 %v697
        %761 = vmatpush1.bf16.msra.mxu0 %v696
        %762 = vmatprep.subr.bf16.mxu0 %v699
        %763 = vmatpush1.bf16.msra.mxu0 %v698
        %764 = vmatprep.subr.bf16.mxu0 %v701
        %765 = vmatpush1.bf16.msra.mxu0 %v700
        %766 = vmatprep.subr.bf16.mxu0 %v703
        %767 = vmatpush1.bf16.msra.mxu0 %v702
        %768 = vmatprep.subr.bf16.mxu0 %v705
        %769 = vmatpush1.bf16.msra.mxu0 %v704
        %770 = vmatprep.subr.bf16.mxu0 %v707
        %771 = vmatpush1.bf16.msra.mxu0 %v706
        %772 = vmatprep.subr.bf16.mxu0 %v709
        %773 = vmatpush1.bf16.msra.mxu0 %v708
        %774 = vmatprep.subr.bf16.mxu0 %v711
        %775 = vmatpush1.bf16.msra.mxu0 %v710
        %776 = vmatprep.subr.bf16.mxu0 %v713
        %777 = vmatpush1.bf16.msra.mxu0 %v712
        %778 = vmatprep.subr.bf16.mxu0 %v715
        %779 = vmatpush1.bf16.msra.mxu0 %v714
        %780 = vmatprep.subr.bf16.mxu0 %v717
        %781 = vmatpush1.bf16.msra.mxu0 %v716
        %782 = vmatprep.subr.bf16.mxu0 %v719
        %783 = vmatpush1.bf16.msra.mxu0 %v718
        %784 = vmatprep.subr.bf16.mxu0 %v721
        %785 = vmatpush1.bf16.msra.mxu0 %v720
        %786 = vmatprep.mubr.bf16.mxu0 %v531
        %787 = vmatmul.mubr.bf16.gmra.mrb[0].mxu0 %v530
        %v788 = vpop.f32.mrb[0].mxu0
        %v789 = vadd.f32 0.0, %v788
        %v790 = vpop.f32.mrb[0].mxu0
        %v791 = vadd.f32 0.0, %v790
        %v792 = vpop.f32.mrb[0].mxu0
        %v793 = vadd.f32 0.0, %v792
        %v794 = vpop.f32.mrb[0].mxu0
        %v795 = vadd.f32 0.0, %v794
        %796 = vmatprep.mubr.bf16.mxu0 %v533
        %797 = vmatmul.mubr.bf16.gmra.mrb[0].mxu0 %v532
        %v798 = vpop.f32.mrb[0].mxu0
        %v799 = vadd.f32 0.0, %v798
        %v800 = vpop.f32.mrb[0].mxu0
        %v801 = vadd.f32 0.0, %v800
        %v802 = vpop.f32.mrb[0].mxu0
        %v803 = vadd.f32 0.0, %v802
        %v804 = vpop.f32.mrb[0].mxu0
        %v805 = vadd.f32 0.0, %v804
        %806 = vmatprep.mubr.bf16.mxu0 %v535
        %807 = vmatmul.mubr.bf16.gmra.mrb[0].mxu0 %v534
        %v808 = vpop.f32.mrb[0].mxu0
        %v809 = vadd.f32 0.0, %v808
        %v810 = vpop.f32.mrb[0].mxu0
        %v811 = vadd.f32 0.0, %v810
        %v812 = vpop.f32.mrb[0].mxu0
        %v813 = vadd.f32 0.0, %v812
        %v814 = vpop.f32.mrb[0].mxu0
        %v815 = vadd.f32 0.0, %v814
        %816 = vmatprep.mubr.bf16.mxu0 %v537
        %817 = vmatmul.mubr.bf16.gmra.mrb[0].mxu0 %v536
        %v818 = vpop.f32.mrb[0].mxu0
        %v819 = vadd.f32 0.0, %v818
        %v820 = vpop.f32.mrb[0].mxu0
        %v821 = vadd.f32 0.0, %v820
        %v822 = vpop.f32.mrb[0].mxu0
        %v823 = vadd.f32 0.0, %v822
        %v824 = vpop.f32.mrb[0].mxu0
        %v825 = vadd.f32 0.0, %v824
        %826 = vmatprep.mubr.bf16.mxu0 %v539
        %827 = vmatmul.mubr.bf16.gmra.mrb[0].mxu0 %v538
        %v828 = vpop.f32.mrb[0].mxu0
        %v829 = vadd.f32 0.0, %v828
        %v830 = vpop.f32.mrb[0].mxu0
        %v831 = vadd.f32 0.0, %v830
        %v832 = vpop.f32.mrb[0].mxu0
        %v833 = vadd.f32 0.0, %v832
        %v834 = vpop.f32.mrb[0].mxu0
        %v835 = vadd.f32 0.0, %v834
        %836 = vmatprep.mubr.bf16.mxu0 %v541
        %837 = vmatmul.mubr.bf16.gmra.mrb[0].mxu0 %v540
        %v838 = vpop.f32.mrb[0].mxu0
        %v839 = vadd.f32 0.0, %v838
        %v840 = vpop.f32.mrb[0].mxu0
        %v841 = vadd.f32 0.0, %v840
        %v842 = vpop.f32.mrb[0].mxu0
        %v843 = vadd.f32 0.0, %v842
        %v844 = vpop.f32.mrb[0].mxu0
        %v845 = vadd.f32 0.0, %v844
        %846 = vmatprep.mubr.bf16.mxu0 %v543
        %847 = vmatmul.mubr.bf16.gmra.mrb[0].mxu0 %v542
        %v848 = vpop.f32.mrb[0].mxu0
        %v849 = vadd.f32 0.0, %v848
        %v850 = vpop.f32.mrb[0].mxu0
        %v851 = vadd.f32 0.0, %v850
        %v852 = vpop.f32.mrb[0].mxu0
        %v853 = vadd.f32 0.0, %v852
        %v854 = vpop.f32.mrb[0].mxu0
        %v855 = vadd.f32 0.0, %v854
        %856 = vmatprep.mubr.bf16.mxu0 %v545
        %857 = vmatmul.mubr.bf16.gmra.mrb[0].mxu0 %v544
        %v858 = vpop.f32.mrb[0].mxu0
        %v859 = vadd.f32 0.0, %v858
        %v860 = vpop.f32.mrb[0].mxu0
        %v861 = vadd.f32 0.0, %v860
        %v862 = vpop.f32.mrb[0].mxu0
        %v863 = vadd.f32 0.0, %v862
        %v864 = vpop.f32.mrb[0].mxu0
        %v865 = vadd.f32 0.0, %v864
        %866 = vmatprep.mubr.bf16.mxu0 %v547
        %867 = vmatmul.mubr.bf16.gmra.mrb[0].mxu0 %v546
        %v868 = vpop.f32.mrb[0].mxu0
        %v869 = vadd.f32 0.0, %v868
        %v870 = vpop.f32.mrb[0].mxu0
        %v871 = vadd.f32 0.0, %v870
        %v872 = vpop.f32.mrb[0].mxu0
        %v873 = vadd.f32 0.0, %v872
        %v874 = vpop.f32.mrb[0].mxu0
        %v875 = vadd.f32 0.0, %v874
        %876 = vmatprep.mubr.bf16.mxu0 %v549
        %877 = vmatmul.mubr.bf16.gmra.mrb[0].mxu0 %v548
        %v878 = vpop.f32.mrb[0].mxu0
        %v879 = vadd.f32 0.0, %v878
        %v880 = vpop.f32.mrb[0].mxu0
        %v881 = vadd.f32 0.0, %v880
        %v882 = vpop.f32.mrb[0].mxu0
        %v883 = vadd.f32 0.0, %v882
        %v884 = vpop.f32.mrb[0].mxu0
        %v885 = vadd.f32 0.0, %v884
        %886 = vmatprep.mubr.bf16.mxu0 %v551
        %887 = vmatmul.mubr.bf16.gmra.mrb[0].mxu0 %v550
        %v888 = vpop.f32.mrb[0].mxu0
        %v889 = vadd.f32 0.0, %v888
        %v890 = vpop.f32.mrb[0].mxu0
        %v891 = vadd.f32 0.0, %v890
        %v892 = vpop.f32.mrb[0].mxu0
        %v893 = vadd.f32 0.0, %v892
        %v894 = vpop.f32.mrb[0].mxu0
        %v895 = vadd.f32 0.0, %v894
        %896 = vmatprep.mubr.bf16.mxu0 %v553
        %897 = vmatmul.mubr.bf16.gmra.mrb[0].mxu0 %v552
        %v898 = vpop.f32.mrb[0].mxu0
        %v899 = vadd.f32 0.0, %v898
        %v900 = vpop.f32.mrb[0].mxu0
        %v901 = vadd.f32 0.0, %v900
        %v902 = vpop.f32.mrb[0].mxu0
        %v903 = vadd.f32 0.0, %v902
        %v904 = vpop.f32.mrb[0].mxu0
        %v905 = vadd.f32 0.0, %v904
        %906 = vmatprep.mubr.bf16.mxu0 %v555
        %907 = vmatmul.mubr.bf16.gmra.mrb[0].mxu0 %v554
        %v908 = vpop.f32.mrb[0].mxu0
        %v909 = vadd.f32 0.0, %v908
        %v910 = vpop.f32.mrb[0].mxu0
        %v911 = vadd.f32 0.0, %v910
        %v912 = vpop.f32.mrb[0].mxu0
        %v913 = vadd.f32 0.0, %v912
        %v914 = vpop.f32.mrb[0].mxu0
        %v915 = vadd.f32 0.0, %v914
        %916 = vmatprep.mubr.bf16.mxu0 %v557
        %917 = vmatmul.mubr.bf16.gmra.mrb[0].mxu0 %v556
        %v918 = vpop.f32.mrb[0].mxu0
        %v919 = vadd.f32 0.0, %v918
        %v920 = vpop.f32.mrb[0].mxu0
        %v921 = vadd.f32 0.0, %v920
        %v922 = vpop.f32.mrb[0].mxu0
        %v923 = vadd.f32 0.0, %v922
        %v924 = vpop.f32.mrb[0].mxu0
        %v925 = vadd.f32 0.0, %v924
        %926 = vmatprep.mubr.bf16.mxu0 %v559
        %927 = vmatmul.mubr.bf16.gmra.mrb[0].mxu0 %v558
        %v928 = vpop.f32.mrb[0].mxu0
        %v929 = vadd.f32 0.0, %v928
        %v930 = vpop.f32.mrb[0].mxu0
        %v931 = vadd.f32 0.0, %v930
        %v932 = vpop.f32.mrb[0].mxu0
        %v933 = vadd.f32 0.0, %v932
        %v934 = vpop.f32.mrb[0].mxu0
        %v935 = vadd.f32 0.0, %v934
        %936 = vmatprep.mubr.bf16.mxu0 %v561
        %937 = vmatmul.mubr.bf16.gmra.mrb[0].mxu0 %v560
        %v938 = vpop.f32.mrb[0].mxu0
        %v939 = vadd.f32 0.0, %v938
        %v940 = vpop.f32.mrb[0].mxu0
        %v941 = vadd.f32 0.0, %v940
        %v942 = vpop.f32.mrb[0].mxu0
        %v943 = vadd.f32 0.0, %v942
        %v944 = vpop.f32.mrb[0].mxu0
        %v945 = vadd.f32 0.0, %v944
        %946 = vdwg.mxu0
        %p947 = scmp.eq.s32.totalorder %s33, 0
        // Predicated region
        $region41: #{tpu_custom_call.1} parent=35 // pred_check
          %p948 = pneg %p947
        $region42: #{tpu_custom_call.1} parent=35 // pred_check_branch
          %950 = sbr.rel (%p948) target = $region44
        $region43: #{tpu_custom_call.1} parent=35 // pred_region
          %951 = vst [vmem:[%s333] sm:$0xff] %v789
          %952 = vst [vmem:[%s333 + $0x8] sm:$0xff] %v791
          %953 = vst [vmem:[%s333 + $0x10] sm:$0xff] %v793
          %954 = vst [vmem:[%s333 + $0x18] sm:$0xff] %v795
          %955 = vst [vmem:[%s333 + $0x20] sm:$0xff] %v799
          %956 = vst [vmem:[%s333 + $0x28] sm:$0xff] %v801
          %957 = vst [vmem:[%s333 + $0x30] sm:$0xff] %v803
          %958 = vst [vmem:[%s333 + $0x38] sm:$0xff] %v805
          %959 = vst [vmem:[%s333 + $0x40] sm:$0xff] %v809
          %960 = vst [vmem:[%s333 + $0x48] sm:$0xff] %v811
          %961 = vst [vmem:[%s333 + $0x50] sm:$0xff] %v813
          %962 = vst [vmem:[%s333 + $0x58] sm:$0xff] %v815
          %963 = vst [vmem:[%s333 + $0x60] sm:$0xff] %v819
          %964 = vst [vmem:[%s333 + $0x68] sm:$0xff] %v821
          %965 = vst [vmem:[%s333 + $0x70] sm:$0xff] %v823
          %966 = vst [vmem:[%s333 + $0x78] sm:$0xff] %v825
          %967 = vst [vmem:[%s333 + $0x80] sm:$0xff] %v829
          %968 = vst [vmem:[%s333 + $0x88] sm:$0xff] %v831
          %969 = vst [vmem:[%s333 + $0x90] sm:$0xff] %v833
          %970 = vst [vmem:[%s333 + $0x98] sm:$0xff] %v835
          %971 = vst [vmem:[%s333 + $0xa0] sm:$0xff] %v839
          %972 = vst [vmem:[%s333 + $0xa8] sm:$0xff] %v841
          %973 = vst [vmem:[%s333 + $0xb0] sm:$0xff] %v843
          %974 = vst [vmem:[%s333 + $0xb8] sm:$0xff] %v845
          %975 = vst [vmem:[%s333 + $0xc0] sm:$0xff] %v849
          %976 = vst [vmem:[%s333 + $0xc8] sm:$0xff] %v851
          %977 = vst [vmem:[%s333 + $0xd0] sm:$0xff] %v853
          %978 = vst [vmem:[%s333 + $0xd8] sm:$0xff] %v855
          %979 = vst [vmem:[%s333 + $0xe0] sm:$0xff] %v859
          %980 = vst [vmem:[%s333 + $0xe8] sm:$0xff] %v861
          %981 = vst [vmem:[%s333 + $0xf0] sm:$0xff] %v863
          %982 = vst [vmem:[%s333 + $0xf8] sm:$0xff] %v865
          %983 = vst [vmem:[%s333 + $0x100] sm:$0xff] %v869
          %984 = vst [vmem:[%s333 + $0x108] sm:$0xff] %v871
          %985 = vst [vmem:[%s333 + $0x110] sm:$0xff] %v873
          %986 = vst [vmem:[%s333 + $0x118] sm:$0xff] %v875
          %987 = vst [vmem:[%s333 + $0x120] sm:$0xff] %v879
          %988 = vst [vmem:[%s333 + $0x128] sm:$0xff] %v881
          %989 = vst [vmem:[%s333 + $0x130] sm:$0xff] %v883
          %990 = vst [vmem:[%s333 + $0x138] sm:$0xff] %v885
          %991 = vst [vmem:[%s333 + $0x140] sm:$0xff] %v889
          %992 = vst [vmem:[%s333 + $0x148] sm:$0xff] %v891
          %993 = vst [vmem:[%s333 + $0x150] sm:$0xff] %v893
          %994 = vst [vmem:[%s333 + $0x158] sm:$0xff] %v895
          %995 = vst [vmem:[%s333 + $0x160] sm:$0xff] %v899
          %996 = vst [vmem:[%s333 + $0x168] sm:$0xff] %v901
          %997 = vst [vmem:[%s333 + $0x170] sm:$0xff] %v903
          %998 = vst [vmem:[%s333 + $0x178] sm:$0xff] %v905
          %999 = vst [vmem:[%s333 + $0x180] sm:$0xff] %v909
          %1000 = vst [vmem:[%s333 + $0x188] sm:$0xff] %v911
          %1001 = vst [vmem:[%s333 + $0x190] sm:$0xff] %v913
          %1002 = vst [vmem:[%s333 + $0x198] sm:$0xff] %v915
          %1003 = vst [vmem:[%s333 + $0x1a0] sm:$0xff] %v919
          %1004 = vst [vmem:[%s333 + $0x1a8] sm:$0xff] %v921
          %1005 = vst [vmem:[%s333 + $0x1b0] sm:$0xff] %v923
          %1006 = vst [vmem:[%s333 + $0x1b8] sm:$0xff] %v925
          %1007 = vst [vmem:[%s333 + $0x1c0] sm:$0xff] %v929
          %1008 = vst [vmem:[%s333 + $0x1c8] sm:$0xff] %v931
          %1009 = vst [vmem:[%s333 + $0x1d0] sm:$0xff] %v933
          %1010 = vst [vmem:[%s333 + $0x1d8] sm:$0xff] %v935
          %1011 = vst [vmem:[%s333 + $0x1e0] sm:$0xff] %v939
          %1012 = vst [vmem:[%s333 + $0x1e8] sm:$0xff] %v941
          %1013 = vst [vmem:[%s333 + $0x1f0] sm:$0xff] %v943
          %1014 = vst [vmem:[%s333 + $0x1f8] sm:$0xff] %v945
          %v1015 = vld [vmem:[%s345] sm:$0xff]
          %v1016 = vld [vmem:[%s345 + $0x8] sm:$0xff]
          %v1017 = vld [vmem:[%s345 + $0x10] sm:$0xff]
          %v1018 = vld [vmem:[%s345 + $0x18] sm:$0xff]
          %v1019 = vld [vmem:[%s345 + $0x20] sm:$0xff]
          %v1020 = vld [vmem:[%s345 + $0x28] sm:$0xff]
          %v1021 = vld [vmem:[%s345 + $0x30] sm:$0xff]
          %v1022 = vld [vmem:[%s345 + $0x38] sm:$0xff]
          %v1023 = vld [vmem:[%s345 + $0x40] sm:$0xff]
          %v1024 = vld [vmem:[%s345 + $0x48] sm:$0xff]
          %v1025 = vld [vmem:[%s345 + $0x50] sm:$0xff]
          %v1026 = vld [vmem:[%s345 + $0x58] sm:$0xff]
          %v1027 = vld [vmem:[%s345 + $0x60] sm:$0xff]
          %v1028 = vld [vmem:[%s345 + $0x68] sm:$0xff]
          %v1029 = vld [vmem:[%s345 + $0x70] sm:$0xff]
          %v1030 = vld [vmem:[%s345 + $0x78] sm:$0xff]
          %v1031 = vld [vmem:[%s345 + $0x80] sm:$0xff]
          %v1032 = vld [vmem:[%s345 + $0x88] sm:$0xff]
          %v1033 = vld [vmem:[%s345 + $0x90] sm:$0xff]
          %v1034 = vld [vmem:[%s345 + $0x98] sm:$0xff]
          %v1035 = vld [vmem:[%s345 + $0xa0] sm:$0xff]
          %v1036 = vld [vmem:[%s345 + $0xa8] sm:$0xff]
          %v1037 = vld [vmem:[%s345 + $0xb0] sm:$0xff]
          %v1038 = vld [vmem:[%s345 + $0xb8] sm:$0xff]
          %v1039 = vld [vmem:[%s345 + $0xc0] sm:$0xff]
          %v1040 = vld [vmem:[%s345 + $0xc8] sm:$0xff]
          %v1041 = vld [vmem:[%s345 + $0xd0] sm:$0xff]
          %v1042 = vld [vmem:[%s345 + $0xd8] sm:$0xff]
          %v1043 = vld [vmem:[%s345 + $0xe0] sm:$0xff]
          %v1044 = vld [vmem:[%s345 + $0xe8] sm:$0xff]
          %v1045 = vld [vmem:[%s345 + $0xf0] sm:$0xff]
          %v1046 = vld [vmem:[%s345 + $0xf8] sm:$0xff]
          %v1047 = vld [vmem:[%s350] sm:$0x3]
          %1048 = vset.pattern.permute.xlu0 0
          %1049 = vperm.xlu0 %1048, %v1015
          %v1050 = vpop.permute.xlu0 %1049
          %1051 = vset.pattern.permute.xlu0 0
          %1052 = vperm.xlu0 %1051, %v1016
          %v1053 = vpop.permute.xlu0 %1052
          %1054 = vset.pattern.permute.xlu0 0
          %1055 = vperm.xlu0 %1054, %v1017
          %v1056 = vpop.permute.xlu0 %1055
          %1057 = vset.pattern.permute.xlu0 0
          %1058 = vperm.xlu0 %1057, %v1018
          %v1059 = vpop.permute.xlu0 %1058
          %1060 = vset.pattern.permute.xlu0 0
          %1061 = vperm.xlu0 %1060, %v1019
          %v1062 = vpop.permute.xlu0 %1061
          %1063 = vset.pattern.permute.xlu0 0
          %1064 = vperm.xlu0 %1063, %v1020
          %v1065 = vpop.permute.xlu0 %1064
          %1066 = vset.pattern.permute.xlu0 0
          %1067 = vperm.xlu0 %1066, %v1021
          %v1068 = vpop.permute.xlu0 %1067
          %1069 = vset.pattern.permute.xlu0 0
          %1070 = vperm.xlu0 %1069, %v1022
          %v1071 = vpop.permute.xlu0 %1070
          %1072 = vset.pattern.permute.xlu0 0
          %1073 = vperm.xlu0 %1072, %v1023
          %v1074 = vpop.permute.xlu0 %1073
          %1075 = vset.pattern.permute.xlu0 0
          %1076 = vperm.xlu0 %1075, %v1024
          %v1077 = vpop.permute.xlu0 %1076
          %1078 = vset.pattern.permute.xlu0 0
          %1079 = vperm.xlu0 %1078, %v1025
          %v1080 = vpop.permute.xlu0 %1079
          %1081 = vset.pattern.permute.xlu0 0
          %1082 = vperm.xlu0 %1081, %v1026
          %v1083 = vpop.permute.xlu0 %1082
          %1084 = vset.pattern.permute.xlu0 0
          %1085 = vperm.xlu0 %1084, %v1027
          %v1086 = vpop.permute.xlu0 %1085
          %1087 = vset.pattern.permute.xlu0 0
          %1088 = vperm.xlu0 %1087, %v1028
          %v1089 = vpop.permute.xlu0 %1088
          %1090 = vset.pattern.permute.xlu0 0
          %1091 = vperm.xlu0 %1090, %v1029
          %v1092 = vpop.permute.xlu0 %1091
          %1093 = vset.pattern.permute.xlu0 0
          %1094 = vperm.xlu0 %1093, %v1030
          %v1095 = vpop.permute.xlu0 %1094
          %1096 = vset.pattern.permute.xlu0 0
          %1097 = vperm.xlu0 %1096, %v1031
          %v1098 = vpop.permute.xlu0 %1097
          %1099 = vset.pattern.permute.xlu0 0
          %1100 = vperm.xlu0 %1099, %v1032
          %v1101 = vpop.permute.xlu0 %1100
          %1102 = vset.pattern.permute.xlu0 0
          %1103 = vperm.xlu0 %1102, %v1033
          %v1104 = vpop.permute.xlu0 %1103
          %1105 = vset.pattern.permute.xlu0 0
          %1106 = vperm.xlu0 %1105, %v1034
          %v1107 = vpop.permute.xlu0 %1106
          %1108 = vset.pattern.permute.xlu0 0
          %1109 = vperm.xlu0 %1108, %v1035
          %v1110 = vpop.permute.xlu0 %1109
          %1111 = vset.pattern.permute.xlu0 0
          %1112 = vperm.xlu0 %1111, %v1036
          %v1113 = vpop.permute.xlu0 %1112
          %1114 = vset.pattern.permute.xlu0 0
          %1115 = vperm.xlu0 %1114, %v1037
          %v1116 = vpop.permute.xlu0 %1115
          %1117 = vset.pattern.permute.xlu0 0
          %1118 = vperm.xlu0 %1117, %v1038
          %v1119 = vpop.permute.xlu0 %1118
          %1120 = vset.pattern.permute.xlu0 0
          %1121 = vperm.xlu0 %1120, %v1039
          %v1122 = vpop.permute.xlu0 %1121
          %1123 = vset.pattern.permute.xlu0 0
          %1124 = vperm.xlu0 %1123, %v1040
          %v1125 = vpop.permute.xlu0 %1124
          %1126 = vset.pattern.permute.xlu0 0
          %1127 = vperm.xlu0 %1126, %v1041
          %v1128 = vpop.permute.xlu0 %1127
          %1129 = vset.pattern.permute.xlu0 0
          %1130 = vperm.xlu0 %1129, %v1042
          %v1131 = vpop.permute.xlu0 %1130
          %1132 = vset.pattern.permute.xlu0 0
          %1133 = vperm.xlu0 %1132, %v1043
          %v1134 = vpop.permute.xlu0 %1133
          %1135 = vset.pattern.permute.xlu0 0
          %1136 = vperm.xlu0 %1135, %v1044
          %v1137 = vpop.permute.xlu0 %1136
          %1138 = vset.pattern.permute.xlu0 0
          %1139 = vperm.xlu0 %1138, %v1045
          %v1140 = vpop.permute.xlu0 %1139
          %1141 = vset.pattern.permute.xlu0 0
          %1142 = vperm.xlu0 %1141, %v1046
          %v1143 = vpop.permute.xlu0 %1142
          %v1144 = vlaneseq
          %v1145 = vshrl.u32 %v1144, 7
          %v1146 = vsub.s32 0, %v1145
          %v1147 = vrot.slane %v1047, %v1146
          %v1148 = vlaneseq
          %v1149 = vshrl.u32 %v1148, 7
          %v1150 = vsub.s32 1, %v1149
          %v1151 = vrot.slane %v1047, %v1150
          %vm1152 = vcmp.eq.s32.totalorder %v1050, %v1147
          %vm1153 = vcmp.eq.s32.totalorder %v1050, %v1151
          %vm1154 = vcmp.eq.s32.totalorder %v1053, %v1147
          %vm1155 = vcmp.eq.s32.totalorder %v1053, %v1151
          %vm1156 = vcmp.eq.s32.totalorder %v1056, %v1147
          %vm1157 = vcmp.eq.s32.totalorder %v1056, %v1151
          %vm1158 = vcmp.eq.s32.totalorder %v1059, %v1147
          %vm1159 = vcmp.eq.s32.totalorder %v1059, %v1151
          %vm1160 = vcmp.eq.s32.totalorder %v1062, %v1147
          %vm1161 = vcmp.eq.s32.totalorder %v1062, %v1151
          %vm1162 = vcmp.eq.s32.totalorder %v1065, %v1147
          %vm1163 = vcmp.eq.s32.totalorder %v1065, %v1151
          %vm1164 = vcmp.eq.s32.totalorder %v1068, %v1147
          %vm1165 = vcmp.eq.s32.totalorder %v1068, %v1151
          %vm1166 = vcmp.eq.s32.totalorder %v1071, %v1147
          %vm1167 = vcmp.eq.s32.totalorder %v1071, %v1151
          %vm1168 = vcmp.eq.s32.totalorder %v1074, %v1147
          %vm1169 = vcmp.eq.s32.totalorder %v1074, %v1151
          %vm1170 = vcmp.eq.s32.totalorder %v1077, %v1147
          %vm1171 = vcmp.eq.s32.totalorder %v1077, %v1151
          %vm1172 = vcmp.eq.s32.totalorder %v1080, %v1147
          %vm1173 = vcmp.eq.s32.totalorder %v1080, %v1151
          %vm1174 = vcmp.eq.s32.totalorder %v1083, %v1147
          %vm1175 = vcmp.eq.s32.totalorder %v1083, %v1151
          %vm1176 = vcmp.eq.s32.totalorder %v1086, %v1147
          %vm1177 = vcmp.eq.s32.totalorder %v1086, %v1151
          %vm1178 = vcmp.eq.s32.totalorder %v1089, %v1147
          %vm1179 = vcmp.eq.s32.totalorder %v1089, %v1151
          %vm1180 = vcmp.eq.s32.totalorder %v1092, %v1147
          %vm1181 = vcmp.eq.s32.totalorder %v1092, %v1151
          %vm1182 = vcmp.eq.s32.totalorder %v1095, %v1147
          %vm1183 = vcmp.eq.s32.totalorder %v1095, %v1151
          %vm1184 = vcmp.eq.s32.totalorder %v1098, %v1147
          %vm1185 = vcmp.eq.s32.totalorder %v1098, %v1151
          %vm1186 = vcmp.eq.s32.totalorder %v1101, %v1147
          %vm1187 = vcmp.eq.s32.totalorder %v1101, %v1151
          %vm1188 = vcmp.eq.s32.totalorder %v1104, %v1147
          %vm1189 = vcmp.eq.s32.totalorder %v1104, %v1151
          %vm1190 = vcmp.eq.s32.totalorder %v1107, %v1147
          %vm1191 = vcmp.eq.s32.totalorder %v1107, %v1151
          %vm1192 = vcmp.eq.s32.totalorder %v1110, %v1147
          %vm1193 = vcmp.eq.s32.totalorder %v1110, %v1151
          %vm1194 = vcmp.eq.s32.totalorder %v1113, %v1147
          %vm1195 = vcmp.eq.s32.totalorder %v1113, %v1151
          %vm1196 = vcmp.eq.s32.totalorder %v1116, %v1147
          %vm1197 = vcmp.eq.s32.totalorder %v1116, %v1151
          %vm1198 = vcmp.eq.s32.totalorder %v1119, %v1147
          %vm1199 = vcmp.eq.s32.totalorder %v1119, %v1151
          %vm1200 = vcmp.eq.s32.totalorder %v1122, %v1147
          %vm1201 = vcmp.eq.s32.totalorder %v1122, %v1151
          %vm1202 = vcmp.eq.s32.totalorder %v1125, %v1147
          %vm1203 = vcmp.eq.s32.totalorder %v1125, %v1151
          %vm1204 = vcmp.eq.s32.totalorder %v1128, %v1147
          %vm1205 = vcmp.eq.s32.totalorder %v1128, %v1151
          %vm1206 = vcmp.eq.s32.totalorder %v1131, %v1147
          %vm1207 = vcmp.eq.s32.totalorder %v1131, %v1151
          %vm1208 = vcmp.eq.s32.totalorder %v1134, %v1147
          %vm1209 = vcmp.eq.s32.totalorder %v1134, %v1151
          %vm1210 = vcmp.eq.s32.totalorder %v1137, %v1147
          %vm1211 = vcmp.eq.s32.totalorder %v1137, %v1151
          %vm1212 = vcmp.eq.s32.totalorder %v1140, %v1147
          %vm1213 = vcmp.eq.s32.totalorder %v1140, %v1151
          %vm1214 = vcmp.eq.s32.totalorder %v1143, %v1147
          %vm1215 = vcmp.eq.s32.totalorder %v1143, %v1151
          %v1216 = vsel %vm1152, 1, 0
          %v1217 = vsel %vm1153, 1, 0
          %v1218 = vsel %vm1154, 1, 0
          %v1219 = vsel %vm1155, 1, 0
          %v1220 = vsel %vm1156, 1, 0
          %v1221 = vsel %vm1157, 1, 0
          %v1222 = vsel %vm1158, 1, 0
          %v1223 = vsel %vm1159, 1, 0
          %v1224 = vsel %vm1160, 1, 0
          %v1225 = vsel %vm1161, 1, 0
          %v1226 = vsel %vm1162, 1, 0
          %v1227 = vsel %vm1163, 1, 0
          %v1228 = vsel %vm1164, 1, 0
          %v1229 = vsel %vm1165, 1, 0
          %v1230 = vsel %vm1166, 1, 0
          %v1231 = vsel %vm1167, 1, 0
          %v1232 = vsel %vm1168, 1, 0
          %v1233 = vsel %vm1169, 1, 0
          %v1234 = vsel %vm1170, 1, 0
          %v1235 = vsel %vm1171, 1, 0
          %v1236 = vsel %vm1172, 1, 0
          %v1237 = vsel %vm1173, 1, 0
          %v1238 = vsel %vm1174, 1, 0
          %v1239 = vsel %vm1175, 1, 0
          %v1240 = vsel %vm1176, 1, 0
          %v1241 = vsel %vm1177, 1, 0
          %v1242 = vsel %vm1178, 1, 0
          %v1243 = vsel %vm1179, 1, 0
          %v1244 = vsel %vm1180, 1, 0
          %v1245 = vsel %vm1181, 1, 0
          %v1246 = vsel %vm1182, 1, 0
          %v1247 = vsel %vm1183, 1, 0
          %v1248 = vsel %vm1184, 1, 0
          %v1249 = vsel %vm1185, 1, 0
          %v1250 = vsel %vm1186, 1, 0
          %v1251 = vsel %vm1187, 1, 0
          %v1252 = vsel %vm1188, 1, 0
          %v1253 = vsel %vm1189, 1, 0
          %v1254 = vsel %vm1190, 1, 0
          %v1255 = vsel %vm1191, 1, 0
          %v1256 = vsel %vm1192, 1, 0
          %v1257 = vsel %vm1193, 1, 0
          %v1258 = vsel %vm1194, 1, 0
          %v1259 = vsel %vm1195, 1, 0
          %v1260 = vsel %vm1196, 1, 0
          %v1261 = vsel %vm1197, 1, 0
          %v1262 = vsel %vm1198, 1, 0
          %v1263 = vsel %vm1199, 1, 0
          %v1264 = vsel %vm1200, 1, 0
          %v1265 = vsel %vm1201, 1, 0
          %v1266 = vsel %vm1202, 1, 0
          %v1267 = vsel %vm1203, 1, 0
          %v1268 = vsel %vm1204, 1, 0
          %v1269 = vsel %vm1205, 1, 0
          %v1270 = vsel %vm1206, 1, 0
          %v1271 = vsel %vm1207, 1, 0
          %v1272 = vsel %vm1208, 1, 0
          %v1273 = vsel %vm1209, 1, 0
          %v1274 = vsel %vm1210, 1, 0
          %v1275 = vsel %vm1211, 1, 0
          %v1276 = vsel %vm1212, 1, 0
          %v1277 = vsel %vm1213, 1, 0
          %v1278 = vsel %vm1214, 1, 0
          %v1279 = vsel %vm1215, 1, 0
          %1280 = vst [vmem:[%s340] sm:$0xff] %v1216
          %1281 = vst [vmem:[%s340 + $0x8] sm:$0xff] %v1217
          %1282 = vst [vmem:[%s340 + $0x10] sm:$0xff] %v1218
          %1283 = vst [vmem:[%s340 + $0x18] sm:$0xff] %v1219
          %1284 = vst [vmem:[%s340 + $0x20] sm:$0xff] %v1220
          %1285 = vst [vmem:[%s340 + $0x28] sm:$0xff] %v1221
          %1286 = vst [vmem:[%s340 + $0x30] sm:$0xff] %v1222
          %1287 = vst [vmem:[%s340 + $0x38] sm:$0xff] %v1223
          %1288 = vst [vmem:[%s340 + $0x40] sm:$0xff] %v1224
          %1289 = vst [vmem:[%s340 + $0x48] sm:$0xff] %v1225
          %1290 = vst [vmem:[%s340 + $0x50] sm:$0xff] %v1226
          %1291 = vst [vmem:[%s340 + $0x58] sm:$0xff] %v1227
          %1292 = vst [vmem:[%s340 + $0x60] sm:$0xff] %v1228
          %1293 = vst [vmem:[%s340 + $0x68] sm:$0xff] %v1229
          %1294 = vst [vmem:[%s340 + $0x70] sm:$0xff] %v1230
          %1295 = vst [vmem:[%s340 + $0x78] sm:$0xff] %v1231
          %1296 = vst [vmem:[%s340 + $0x80] sm:$0xff] %v1232
          %1297 = vst [vmem:[%s340 + $0x88] sm:$0xff] %v1233
          %1298 = vst [vmem:[%s340 + $0x90] sm:$0xff] %v1234
          %1299 = vst [vmem:[%s340 + $0x98] sm:$0xff] %v1235
          %1300 = vst [vmem:[%s340 + $0xa0] sm:$0xff] %v1236
          %1301 = vst [vmem:[%s340 + $0xa8] sm:$0xff] %v1237
          %1302 = vst [vmem:[%s340 + $0xb0] sm:$0xff] %v1238
          %1303 = vst [vmem:[%s340 + $0xb8] sm:$0xff] %v1239
          %1304 = vst [vmem:[%s340 + $0xc0] sm:$0xff] %v1240
          %1305 = vst [vmem:[%s340 + $0xc8] sm:$0xff] %v1241
          %1306 = vst [vmem:[%s340 + $0xd0] sm:$0xff] %v1242
          %1307 = vst [vmem:[%s340 + $0xd8] sm:$0xff] %v1243
          %1308 = vst [vmem:[%s340 + $0xe0] sm:$0xff] %v1244
          %1309 = vst [vmem:[%s340 + $0xe8] sm:$0xff] %v1245
          %1310 = vst [vmem:[%s340 + $0xf0] sm:$0xff] %v1246
          %1311 = vst [vmem:[%s340 + $0xf8] sm:$0xff] %v1247
          %1312 = vst [vmem:[%s340 + $0x100] sm:$0xff] %v1248
          %1313 = vst [vmem:[%s340 + $0x108] sm:$0xff] %v1249
          %1314 = vst [vmem:[%s340 + $0x110] sm:$0xff] %v1250
          %1315 = vst [vmem:[%s340 + $0x118] sm:$0xff] %v1251
          %1316 = vst [vmem:[%s340 + $0x120] sm:$0xff] %v1252
          %1317 = vst [vmem:[%s340 + $0x128] sm:$0xff] %v1253
          %1318 = vst [vmem:[%s340 + $0x130] sm:$0xff] %v1254
          %1319 = vst [vmem:[%s340 + $0x138] sm:$0xff] %v1255
          %1320 = vst [vmem:[%s340 + $0x140] sm:$0xff] %v1256
          %1321 = vst [vmem:[%s340 + $0x148] sm:$0xff] %v1257
          %1322 = vst [vmem:[%s340 + $0x150] sm:$0xff] %v1258
          %1323 = vst [vmem:[%s340 + $0x158] sm:$0xff] %v1259
          %1324 = vst [vmem:[%s340 + $0x160] sm:$0xff] %v1260
          %1325 = vst [vmem:[%s340 + $0x168] sm:$0xff] %v1261
          %1326 = vst [vmem:[%s340 + $0x170] sm:$0xff] %v1262
          %1327 = vst [vmem:[%s340 + $0x178] sm:$0xff] %v1263
          %1328 = vst [vmem:[%s340 + $0x180] sm:$0xff] %v1264
          %1329 = vst [vmem:[%s340 + $0x188] sm:$0xff] %v1265
          %1330 = vst [vmem:[%s340 + $0x190] sm:$0xff] %v1266
          %1331 = vst [vmem:[%s340 + $0x198] sm:$0xff] %v1267
          %1332 = vst [vmem:[%s340 + $0x1a0] sm:$0xff] %v1268
          %1333 = vst [vmem:[%s340 + $0x1a8] sm:$0xff] %v1269
          %1334 = vst [vmem:[%s340 + $0x1b0] sm:$0xff] %v1270
          %1335 = vst [vmem:[%s340 + $0x1b8] sm:$0xff] %v1271
          %1336 = vst [vmem:[%s340 + $0x1c0] sm:$0xff] %v1272
          %1337 = vst [vmem:[%s340 + $0x1c8] sm:$0xff] %v1273
          %1338 = vst [vmem:[%s340 + $0x1d0] sm:$0xff] %v1274
          %1339 = vst [vmem:[%s340 + $0x1d8] sm:$0xff] %v1275
          %1340 = vst [vmem:[%s340 + $0x1e0] sm:$0xff] %v1276
          %1341 = vst [vmem:[%s340 + $0x1e8] sm:$0xff] %v1277
          %1342 = vst [vmem:[%s340 + $0x1f0] sm:$0xff] %v1278
          %1343 = vst [vmem:[%s340 + $0x1f8] sm:$0xff] %v1279
        $region44: #{tpu_custom_call.1} parent=35 // pred_fallthru
          _
        %p1344 = scmp.gt.s32.totalorder %s33, 0
        // Predicated region
        $region45: #{tpu_custom_call.1} parent=35 // pred_check
          %p1345 = pneg %p1344
        $region46: #{tpu_custom_call.1} parent=35 // pred_check_branch
          %1347 = sbr.rel (%p1345) target = $region48
        $region47: #{tpu_custom_call.1} parent=35 // pred_region
          %v1348 = vld [vmem:[%s333] sm:$0xff]
          %v1349 = vld [vmem:[%s333 + $0x8] sm:$0xff]
          %v1350 = vld [vmem:[%s333 + $0x10] sm:$0xff]
          %v1351 = vld [vmem:[%s333 + $0x18] sm:$0xff]
          %v1352 = vld [vmem:[%s333 + $0x20] sm:$0xff]
          %v1353 = vld [vmem:[%s333 + $0x28] sm:$0xff]
          %v1354 = vld [vmem:[%s333 + $0x30] sm:$0xff]
          %v1355 = vld [vmem:[%s333 + $0x38] sm:$0xff]
          %v1356 = vld [vmem:[%s333 + $0x40] sm:$0xff]
          %v1357 = vld [vmem:[%s333 + $0x48] sm:$0xff]
          %v1358 = vld [vmem:[%s333 + $0x50] sm:$0xff]
          %v1359 = vld [vmem:[%s333 + $0x58] sm:$0xff]
          %v1360 = vld [vmem:[%s333 + $0x60] sm:$0xff]
          %v1361 = vld [vmem:[%s333 + $0x68] sm:$0xff]
          %v1362 = vld [vmem:[%s333 + $0x70] sm:$0xff]
          %v1363 = vld [vmem:[%s333 + $0x78] sm:$0xff]
          %v1364 = vld [vmem:[%s333 + $0x80] sm:$0xff]
          %v1365 = vld [vmem:[%s333 + $0x88] sm:$0xff]
          %v1366 = vld [vmem:[%s333 + $0x90] sm:$0xff]
          %v1367 = vld [vmem:[%s333 + $0x98] sm:$0xff]
          %v1368 = vld [vmem:[%s333 + $0xa0] sm:$0xff]
          %v1369 = vld [vmem:[%s333 + $0xa8] sm:$0xff]
          %v1370 = vld [vmem:[%s333 + $0xb0] sm:$0xff]
          %v1371 = vld [vmem:[%s333 + $0xb8] sm:$0xff]
          %v1372 = vld [vmem:[%s333 + $0xc0] sm:$0xff]
          %v1373 = vld [vmem:[%s333 + $0xc8] sm:$0xff]
          %v1374 = vld [vmem:[%s333 + $0xd0] sm:$0xff]
          %v1375 = vld [vmem:[%s333 + $0xd8] sm:$0xff]
          %v1376 = vld [vmem:[%s333 + $0xe0] sm:$0xff]
          %v1377 = vld [vmem:[%s333 + $0xe8] sm:$0xff]
          %v1378 = vld [vmem:[%s333 + $0xf0] sm:$0xff]
          %v1379 = vld [vmem:[%s333 + $0xf8] sm:$0xff]
          %v1380 = vld [vmem:[%s333 + $0x100] sm:$0xff]
          %v1381 = vld [vmem:[%s333 + $0x108] sm:$0xff]
          %v1382 = vld [vmem:[%s333 + $0x110] sm:$0xff]
          %v1383 = vld [vmem:[%s333 + $0x118] sm:$0xff]
          %v1384 = vld [vmem:[%s333 + $0x120] sm:$0xff]
          %v1385 = vld [vmem:[%s333 + $0x128] sm:$0xff]
          %v1386 = vld [vmem:[%s333 + $0x130] sm:$0xff]
          %v1387 = vld [vmem:[%s333 + $0x138] sm:$0xff]
          %v1388 = vld [vmem:[%s333 + $0x140] sm:$0xff]
          %v1389 = vld [vmem:[%s333 + $0x148] sm:$0xff]
          %v1390 = vld [vmem:[%s333 + $0x150] sm:$0xff]
          %v1391 = vld [vmem:[%s333 + $0x158] sm:$0xff]
          %v1392 = vld [vmem:[%s333 + $0x160] sm:$0xff]
          %v1393 = vld [vmem:[%s333 + $0x168] sm:$0xff]
          %v1394 = vld [vmem:[%s333 + $0x170] sm:$0xff]
          %v1395 = vld [vmem:[%s333 + $0x178] sm:$0xff]
          %v1396 = vld [vmem:[%s333 + $0x180] sm:$0xff]
          %v1397 = vld [vmem:[%s333 + $0x188] sm:$0xff]
          %v1398 = vld [vmem:[%s333 + $0x190] sm:$0xff]
          %v1399 = vld [vmem:[%s333 + $0x198] sm:$0xff]
          %v1400 = vld [vmem:[%s333 + $0x1a0] sm:$0xff]
          %v1401 = vld [vmem:[%s333 + $0x1a8] sm:$0xff]
          %v1402 = vld [vmem:[%s333 + $0x1b0] sm:$0xff]
          %v1403 = vld [vmem:[%s333 + $0x1b8] sm:$0xff]
          %v1404 = vld [vmem:[%s333 + $0x1c0] sm:$0xff]
          %v1405 = vld [vmem:[%s333 + $0x1c8] sm:$0xff]
          %v1406 = vld [vmem:[%s333 + $0x1d0] sm:$0xff]
          %v1407 = vld [vmem:[%s333 + $0x1d8] sm:$0xff]
          %v1408 = vld [vmem:[%s333 + $0x1e0] sm:$0xff]
          %v1409 = vld [vmem:[%s333 + $0x1e8] sm:$0xff]
          %v1410 = vld [vmem:[%s333 + $0x1f0] sm:$0xff]
          %v1411 = vld [vmem:[%s333 + $0x1f8] sm:$0xff]
          %v1412 = vadd.f32 %v1348, %v789
          %v1413 = vadd.f32 %v1349, %v791
          %v1414 = vadd.f32 %v1350, %v793
          %v1415 = vadd.f32 %v1351, %v795
          %v1416 = vadd.f32 %v1352, %v799
          %v1417 = vadd.f32 %v1353, %v801
          %v1418 = vadd.f32 %v1354, %v803
          %v1419 = vadd.f32 %v1355, %v805
          %v1420 = vadd.f32 %v1356, %v809
          %v1421 = vadd.f32 %v1357, %v811
          %v1422 = vadd.f32 %v1358, %v813
          %v1423 = vadd.f32 %v1359, %v815
          %v1424 = vadd.f32 %v1360, %v819
          %v1425 = vadd.f32 %v1361, %v821
          %v1426 = vadd.f32 %v1362, %v823
          %v1427 = vadd.f32 %v1363, %v825
          %v1428 = vadd.f32 %v1364, %v829
          %v1429 = vadd.f32 %v1365, %v831
          %v1430 = vadd.f32 %v1366, %v833
          %v1431 = vadd.f32 %v1367, %v835
          %v1432 = vadd.f32 %v1368, %v839
          %v1433 = vadd.f32 %v1369, %v841
          %v1434 = vadd.f32 %v1370, %v843
          %v1435 = vadd.f32 %v1371, %v845
          %v1436 = vadd.f32 %v1372, %v849
          %v1437 = vadd.f32 %v1373, %v851
          %v1438 = vadd.f32 %v1374, %v853
          %v1439 = vadd.f32 %v1375, %v855
          %v1440 = vadd.f32 %v1376, %v859
          %v1441 = vadd.f32 %v1377, %v861
          %v1442 = vadd.f32 %v1378, %v863
          %v1443 = vadd.f32 %v1379, %v865
          %v1444 = vadd.f32 %v1380, %v869
          %v1445 = vadd.f32 %v1381, %v871
          %v1446 = vadd.f32 %v1382, %v873
          %v1447 = vadd.f32 %v1383, %v875
          %v1448 = vadd.f32 %v1384, %v879
          %v1449 = vadd.f32 %v1385, %v881
          %v1450 = vadd.f32 %v1386, %v883
          %v1451 = vadd.f32 %v1387, %v885
          %v1452 = vadd.f32 %v1388, %v889
          %v1453 = vadd.f32 %v1389, %v891
          %v1454 = vadd.f32 %v1390, %v893
          %v1455 = vadd.f32 %v1391, %v895
          %v1456 = vadd.f32 %v1392, %v899
          %v1457 = vadd.f32 %v1393, %v901
          %v1458 = vadd.f32 %v1394, %v903
          %v1459 = vadd.f32 %v1395, %v905
          %v1460 = vadd.f32 %v1396, %v909
          %v1461 = vadd.f32 %v1397, %v911
          %v1462 = vadd.f32 %v1398, %v913
          %v1463 = vadd.f32 %v1399, %v915
          %v1464 = vadd.f32 %v1400, %v919
          %v1465 = vadd.f32 %v1401, %v921
          %v1466 = vadd.f32 %v1402, %v923
          %v1467 = vadd.f32 %v1403, %v925
          %v1468 = vadd.f32 %v1404, %v929
          %v1469 = vadd.f32 %v1405, %v931
          %v1470 = vadd.f32 %v1406, %v933
          %v1471 = vadd.f32 %v1407, %v935
          %v1472 = vadd.f32 %v1408, %v939
          %v1473 = vadd.f32 %v1409, %v941
          %v1474 = vadd.f32 %v1410, %v943
          %v1475 = vadd.f32 %v1411, %v945
          %1476 = vst [vmem:[%s333] sm:$0xff] %v1412
          %1477 = vst [vmem:[%s333 + $0x8] sm:$0xff] %v1413
          %1478 = vst [vmem:[%s333 + $0x10] sm:$0xff] %v1414
          %1479 = vst [vmem:[%s333 + $0x18] sm:$0xff] %v1415
          %1480 = vst [vmem:[%s333 + $0x20] sm:$0xff] %v1416
          %1481 = vst [vmem:[%s333 + $0x28] sm:$0xff] %v1417
          %1482 = vst [vmem:[%s333 + $0x30] sm:$0xff] %v1418
          %1483 = vst [vmem:[%s333 + $0x38] sm:$0xff] %v1419
          %1484 = vst [vmem:[%s333 + $0x40] sm:$0xff] %v1420
          %1485 = vst [vmem:[%s333 + $0x48] sm:$0xff] %v1421
          %1486 = vst [vmem:[%s333 + $0x50] sm:$0xff] %v1422
          %1487 = vst [vmem:[%s333 + $0x58] sm:$0xff] %v1423
          %1488 = vst [vmem:[%s333 + $0x60] sm:$0xff] %v1424
          %1489 = vst [vmem:[%s333 + $0x68] sm:$0xff] %v1425
          %1490 = vst [vmem:[%s333 + $0x70] sm:$0xff] %v1426
          %1491 = vst [vmem:[%s333 + $0x78] sm:$0xff] %v1427
          %1492 = vst [vmem:[%s333 + $0x80] sm:$0xff] %v1428
          %1493 = vst [vmem:[%s333 + $0x88] sm:$0xff] %v1429
          %1494 = vst [vmem:[%s333 + $0x90] sm:$0xff] %v1430
          %1495 = vst [vmem:[%s333 + $0x98] sm:$0xff] %v1431
          %1496 = vst [vmem:[%s333 + $0xa0] sm:$0xff] %v1432
          %1497 = vst [vmem:[%s333 + $0xa8] sm:$0xff] %v1433
          %1498 = vst [vmem:[%s333 + $0xb0] sm:$0xff] %v1434
          %1499 = vst [vmem:[%s333 + $0xb8] sm:$0xff] %v1435
          %1500 = vst [vmem:[%s333 + $0xc0] sm:$0xff] %v1436
          %1501 = vst [vmem:[%s333 + $0xc8] sm:$0xff] %v1437
          %1502 = vst [vmem:[%s333 + $0xd0] sm:$0xff] %v1438
          %1503 = vst [vmem:[%s333 + $0xd8] sm:$0xff] %v1439
          %1504 = vst [vmem:[%s333 + $0xe0] sm:$0xff] %v1440
          %1505 = vst [vmem:[%s333 + $0xe8] sm:$0xff] %v1441
          %1506 = vst [vmem:[%s333 + $0xf0] sm:$0xff] %v1442
          %1507 = vst [vmem:[%s333 + $0xf8] sm:$0xff] %v1443
          %1508 = vst [vmem:[%s333 + $0x100] sm:$0xff] %v1444
          %1509 = vst [vmem:[%s333 + $0x108] sm:$0xff] %v1445
          %1510 = vst [vmem:[%s333 + $0x110] sm:$0xff] %v1446
          %1511 = vst [vmem:[%s333 + $0x118] sm:$0xff] %v1447
          %1512 = vst [vmem:[%s333 + $0x120] sm:$0xff] %v1448
          %1513 = vst [vmem:[%s333 + $0x128] sm:$0xff] %v1449
          %1514 = vst [vmem:[%s333 + $0x130] sm:$0xff] %v1450
          %1515 = vst [vmem:[%s333 + $0x138] sm:$0xff] %v1451
          %1516 = vst [vmem:[%s333 + $0x140] sm:$0xff] %v1452
          %1517 = vst [vmem:[%s333 + $0x148] sm:$0xff] %v1453
          %1518 = vst [vmem:[%s333 + $0x150] sm:$0xff] %v1454
          %1519 = vst [vmem:[%s333 + $0x158] sm:$0xff] %v1455
          %1520 = vst [vmem:[%s333 + $0x160] sm:$0xff] %v1456
          %1521 = vst [vmem:[%s333 + $0x168] sm:$0xff] %v1457
          %1522 = vst [vmem:[%s333 + $0x170] sm:$0xff] %v1458
          %1523 = vst [vmem:[%s333 + $0x178] sm:$0xff] %v1459
          %1524 = vst [vmem:[%s333 + $0x180] sm:$0xff] %v1460
          %1525 = vst [vmem:[%s333 + $0x188] sm:$0xff] %v1461
          %1526 = vst [vmem:[%s333 + $0x190] sm:$0xff] %v1462
          %1527 = vst [vmem:[%s333 + $0x198] sm:$0xff] %v1463
          %1528 = vst [vmem:[%s333 + $0x1a0] sm:$0xff] %v1464
          %1529 = vst [vmem:[%s333 + $0x1a8] sm:$0xff] %v1465
          %1530 = vst [vmem:[%s333 + $0x1b0] sm:$0xff] %v1466
          %1531 = vst [vmem:[%s333 + $0x1b8] sm:$0xff] %v1467
          %1532 = vst [vmem:[%s333 + $0x1c0] sm:$0xff] %v1468
          %1533 = vst [vmem:[%s333 + $0x1c8] sm:$0xff] %v1469
          %1534 = vst [vmem:[%s333 + $0x1d0] sm:$0xff] %v1470
          %1535 = vst [vmem:[%s333 + $0x1d8] sm:$0xff] %v1471
          %1536 = vst [vmem:[%s333 + $0x1e0] sm:$0xff] %v1472
          %1537 = vst [vmem:[%s333 + $0x1e8] sm:$0xff] %v1473
          %1538 = vst [vmem:[%s333 + $0x1f0] sm:$0xff] %v1474
          %1539 = vst [vmem:[%s333 + $0x1f8] sm:$0xff] %v1475
        $region48: #{tpu_custom_call.1} parent=35 // pred_fallthru
          _
        %s1540 = sand.u32 %s163, 1
        %s1541 = scalar_lea.sflag [#allocation4], %s1540
        %s1542 = sand.u32 %s163, 1
        %s1543 = smul.addr %s1542, 512
        %s1544 = scalar_lea.vmem [#allocation5], %s1543
        %s1545 = sand.u32 %s191, 1
        %s1546 = scalar_lea.sflag [#allocation7], %s1545
        %s1547 = sand.u32 %s191, 1
        %s1548 = smul.addr %s1547, 512
        %s1549 = scalar_lea.vmem [#allocation6], %s1548
        // Predicated region
        $region49: #{tpu_custom_call.1} parent=35 // pred_check
          %p1550 = pneg %p173
        $region50: #{tpu_custom_call.1} parent=35 // pred_check_branch
          %1552 = sbr.rel (%p1550) target = $region52
        $region51: #{tpu_custom_call.1} parent=35 // pred_region
          %s1553 = smul.u32 32, %s31
          %s1554 = smul.u32 2, %s32
          %s1556 = ssub.s32 8192, 8192
          %1557 = vsyncadd %s1541, %s1556
          %s1558 = smul.addr %s1553, 4
          %s1559 = sadd.s32 %s1554, %s1558
          %s1560 = smul.addr %s1559, 128
          %s1561 = scalar_lea.hbm %s4, %s1560
          %s1562 = sshll.u32 %s1544, 4
          %s1563 = int_to_ptr.vmem [resolvable:$true] %s1562
          %1568 = dma.vmem_to_hbm [thread:$0]  %s1563, 8192, %s1561, %s1541, 256, 512, 16
        $region52: #{tpu_custom_call.1} parent=35 // pred_fallthru
          _
        // Predicated region
        $region53: #{tpu_custom_call.1} parent=35 // pred_check
          %p1569 = pneg %p201
        $region54: #{tpu_custom_call.1} parent=35 // pred_check_branch
          %1571 = sbr.rel (%p1569) target = $region56
        $region55: #{tpu_custom_call.1} parent=35 // pred_region
          %s1572 = smul.u32 32, %s31
          %s1573 = smul.u32 2, %s32
          %s1575 = ssub.s32 8192, 8192
          %1576 = vsyncadd %s1546, %s1575
          %s1577 = smul.addr %s1572, 4
          %s1578 = sadd.s32 %s1573, %s1577
          %s1579 = smul.addr %s1578, 128
          %s1580 = scalar_lea.hbm %s5, %s1579
          %s1581 = sshll.u32 %s1549, 4
          %s1582 = int_to_ptr.vmem [resolvable:$true] %s1581
          %1587 = dma.vmem_to_hbm [thread:$0]  %s1582, 8192, %s1580, %s1546, 256, 512, 16
        $region56: #{tpu_custom_call.1} parent=35 // pred_fallthru
          _
      $region36: #{tpu_custom_call.1} parent=5 // pred_fallthru
        _
      %p1588 = scmp.le.s32.totalorder 2, %s21
      // Predicated region
      $region57: #{tpu_custom_call.1} parent=5 // pred_check
        %p1589 = pneg %p1588
      $region58: #{tpu_custom_call.1} parent=5 // pred_check_branch
        %1591 = sbr.rel (%p1589) target = $region60
      $region59: #{tpu_custom_call.1} parent=5 // pred_region
        %s1592 = ssub.s32 %s21, 2
        // Predicated region
        $region61: #{tpu_custom_call.1} parent=59 // pred_check
          %p1593 = pneg %p179
        $region62: #{tpu_custom_call.1} parent=59 // pred_check_branch
          %1595 = sbr.rel (%p1593) target = $region64
        $region63: #{tpu_custom_call.1} parent=59 // pred_region
          %s1596 = sand.u32 %s164, 1
          %s1597 = scalar_lea.sflag [#allocation4], %s1596
          %s1598 = sand.u32 %s164, 1
          %s1599 = smul.addr %s1598, 512
          %s1600 = scalar_lea.vmem [#allocation5], %s1599
          %1601 = dma.done %s1597, 8192
        $region64: #{tpu_custom_call.1} parent=59 // pred_fallthru
          _
        // Predicated region
        $region65: #{tpu_custom_call.1} parent=59 // pred_check
          %p1602 = pneg %p207
        $region66: #{tpu_custom_call.1} parent=59 // pred_check_branch
          %1604 = sbr.rel (%p1602) target = $region68
        $region67: #{tpu_custom_call.1} parent=59 // pred_region
          %s1605 = sand.u32 %s192, 1
          %s1606 = scalar_lea.sflag [#allocation7], %s1605
          %s1607 = sand.u32 %s192, 1
          %s1608 = smul.addr %s1607, 512
          %s1609 = scalar_lea.vmem [#allocation6], %s1608
          %1610 = dma.done %s1606, 8192
        $region68: #{tpu_custom_call.1} parent=59 // pred_fallthru
          _
      $region60: #{tpu_custom_call.1} parent=5 // pred_fallthru
        _
    $region6: #{tpu_custom_call.1} parent=1 // loop_footer
      %s25 = sadd.s32 1, %s21
    $region7: #{tpu_custom_call.1} parent=1 // loop_footer_branch
      %20 = sbr.rel target = $region3
    $region8: #{tpu_custom_call.1} parent=1 // loop_exit
      _
    %1611 = vsyncpa [#allocation3], 1
    %s1612 = scalar_lea.sflag [#allocation3], 1
    %1613 = vsyncpa %s1612, 1
    %1614 = vsyncpa [#allocation4], 1
    %s1615 = scalar_lea.sflag [#allocation4], 1
    %1616 = vsyncpa %s1615, 1
    %1617 = vsyncpa [#allocation7], 1
    %s1618 = scalar_lea.sflag [#allocation7], 1
    %1619 = vsyncpa %s1618, 1

</llo_original>
